<compile_context>
chip_gen: v5e
topology: v5e:2x2
jax: 0.10.0
libtpu: 0.0.40
codegen_flags: <defaults>
</compile_context>

<pallas_src>
import functools

import jax
import jax.numpy as jnp
from jax.experimental import pallas as pl
from jax.experimental.pallas import tpu as pltpu


def _embeddings_kernel(ids_ref, pos_ids_ref,            # scalar-prefetch (SMEM)
                       wtab_hbm, ptab_hbm,              # HBM tables (pl.ANY)
                       gamma_ref, beta_ref,             # (1, H) VMEM
                       out_ref,                         # (TILE_T, H) VMEM
                       wrows, prows, wsem, psem,        # scratch
                       *, eps, tile_t):
    t = pl.program_id(0)
    base = t * tile_t

    # --- DMA row gather: issue all copies for this tile, then wait. ---------
    copies = []
    for i in range(tile_t):                     # static unroll (tile_t small)
        wid = ids_ref[base + i]                 # scalar read from SMEM
        pid = pos_ids_ref[base + i]
        cw = pltpu.make_async_copy(wtab_hbm.at[wid], wrows.at[i], wsem.at[i])
        cp = pltpu.make_async_copy(ptab_hbm.at[pid], prows.at[i], psem.at[i])
        cw.start()
        cp.start()
        copies.append((cw, cp))
    for cw, cp in copies:
        cw.wait()
        cp.wait()

    # --- add + LayerNorm over the hidden axis (biased variance) -------------
    emb = wrows[...] + prows[...]                               # (TILE_T, H)
    mean = jnp.mean(emb, axis=-1, keepdims=True)
    var = jnp.mean((emb - mean) ** 2, axis=-1, keepdims=True)
    normed = (emb - mean) * jax.lax.rsqrt(var + eps)
    out = normed * gamma_ref[...] + beta_ref[...]

    # Dropout: identity in eval mode.
    # TODO(synk): train-mode dropout (pltpu.prng_seed / prng_random_bits mask) omitted.
    out_ref[...] = out.astype(out_ref.dtype)


def embeddings_forward(input_ids, word_table, pos_table, gamma, beta,
                       *, eps=1e-12, tile_t=8):
    """input_ids: [B, S] int -> [B, S, H] float32."""
    B, S = input_ids.shape
    V, H = word_table.shape
    P, H2 = pos_table.shape
    assert H == H2
    assert S <= P, "sequence length exceeds max_position_embeddings"

    T = B * S
    n_tiles = pl.cdiv(T, tile_t)
    T_pad = n_tiles * tile_t

    # Flatten tokens; position id of flat token i is (i % S).
    ids_flat = input_ids.astype(jnp.int32).reshape(T)
    pos_flat = jnp.tile(jnp.arange(S, dtype=jnp.int32), B)
    if T_pad != T:
        pad = T_pad - T
        ids_flat = jnp.concatenate([ids_flat, jnp.zeros((pad,), jnp.int32)])
        pos_flat = jnp.concatenate([pos_flat, jnp.zeros((pad,), jnp.int32)])

    gamma2 = gamma.reshape(1, H).astype(jnp.float32)
    beta2 = beta.reshape(1, H).astype(jnp.float32)

    kernel = functools.partial(_embeddings_kernel, eps=eps, tile_t=tile_t)

    out_flat = pl.pallas_call(
        kernel,
        out_shape=jax.ShapeDtypeStruct((T_pad, H), jnp.float32),
        grid_spec=pltpu.PrefetchScalarGridSpec(
            num_scalar_prefetch=2,          # ids_flat, pos_flat -> SMEM
            grid=(n_tiles,),
            in_specs=[
                pl.BlockSpec(memory_space=pl.ANY),                   # word table (HBM)
                pl.BlockSpec(memory_space=pl.ANY),                   # pos table (HBM)
                pl.BlockSpec((1, H), lambda t, ids, pids: (0, 0)),   # LN gamma
                pl.BlockSpec((1, H), lambda t, ids, pids: (0, 0)),   # LN beta
            ],
            out_specs=pl.BlockSpec((tile_t, H), lambda t, ids, pids: (t, 0)),
            scratch_shapes=[
                pltpu.VMEM((tile_t, H), jnp.float32),    # gathered word rows
                pltpu.VMEM((tile_t, H), jnp.float32),    # gathered pos rows
                pltpu.SemaphoreType.DMA((tile_t,)),      # word-row DMA sems
                pltpu.SemaphoreType.DMA((tile_t,)),      # pos-row DMA sems
            ],
        ),
        compiler_params=pltpu.CompilerParams(
            dimension_semantics=("parallel",)),
    )(ids_flat, pos_flat,
      word_table.astype(jnp.float32), pos_table.astype(jnp.float32),
      gamma2, beta2)

    return out_flat[:T].reshape(B, S, H)


if __name__ == "__main__":
    # Synthetic "config" (small, but lane-dense hidden size: H multiple of 128).
    vocab_size = 64
    hidden_size = 128
    max_position_embeddings = 16
    initializer_range = 0.02
    ln_eps = 1e-12
    B, S = 2, 8

    key = jax.random.PRNGKey(0)
    k_ids, k_w, k_p = jax.random.split(key, 3)

    # Deterministic parameter init (mirrors init_weights: normal(0, initializer_range)).
    word_table = initializer_range * jax.random.normal(
        k_w, (vocab_size, hidden_size), dtype=jnp.float32)
    pos_table = initializer_range * jax.random.normal(
        k_p, (max_position_embeddings, hidden_size), dtype=jnp.float32)
    gamma = jnp.ones((hidden_size,), dtype=jnp.float32)   # LayerNorm weight
    beta = jnp.zeros((hidden_size,), dtype=jnp.float32)   # LayerNorm bias

    input_ids = jax.random.randint(k_ids, (B, S), 0, vocab_size, dtype=jnp.int32)

    out = embeddings_forward(input_ids, word_table, pos_table, gamma, beta,
                             eps=ln_eps)
    out = jax.block_until_ready(out)

    # Pure-JAX reference for a sanity check.
    words_ref = jnp.take(word_table, input_ids, axis=0)
    pos_ref = pos_table[:S][None, :, :]
    emb_ref = words_ref + pos_ref
    mean = emb_ref.mean(-1, keepdims=True)
    var = ((emb_ref - mean) ** 2).mean(-1, keepdims=True)
    ref = (emb_ref - mean) / jnp.sqrt(var + ln_eps) * gamma + beta

    assert out.shape == (B, S, hidden_size)
    assert jnp.allclose(out, ref, atol=1e-5, rtol=1e-5)

    print("KERNEL_OK")
</pallas_src>

<mosaic_0001>
module attributes {stable_mosaic.version = 11 : i64} {
  func.func @_embeddings_kernel(%arg0: i32, %arg1: memref<16xi32, #tpu.memory_space<smem>>, %arg2: memref<16xi32, #tpu.memory_space<smem>>, %arg3: memref<64x128xf32, #tpu.memory_space<any>>, %arg4: memref<16x128xf32, #tpu.memory_space<any>>, %arg5: memref<1x128xf32, #tpu.memory_space<vmem>>, %arg6: memref<1x128xf32, #tpu.memory_space<vmem>>, %arg7: memref<8x128xf32, #tpu.memory_space<vmem>>, %arg8: memref<8x128xf32, #tpu.memory_space<vmem>>, %arg9: memref<8x128xf32, #tpu.memory_space<vmem>>, %arg10: memref<8x!tpu.dma_semaphore, #tpu.memory_space<semaphore_mem>>, %arg11: memref<8x!tpu.dma_semaphore, #tpu.memory_space<semaphore_mem>>) attributes {dimension_semantics = [#tpu.dimension_semantics<parallel>], iteration_bounds = array<i64: 2>, scalar_prefetch = 2 : i64, scratch_operands = 4 : i64, tpu.core_type = #tpu.core_type<tc>, window_params = [{}, {}, {pipeline_mode = #tpu.pipeline_mode<synchronous>, transform_indices = @transform_2, window_bounds = array<i64: 1, 128>}, {pipeline_mode = #tpu.pipeline_mode<synchronous>, transform_indices = @transform_3, window_bounds = array<i64: 1, 128>}, {transform_indices = @transform_4, window_bounds = array<i64: 8, 128>}]} {
    %c8_i32 = arith.constant 8 : i32
    %0 = arith.muli %arg0, %c8_i32 : i32
    %c0_i32 = arith.constant 0 : i32
    %1 = arith.addi %0, %c0_i32 : i32
    %2 = arith.index_cast %1 : i32 to index
    %3 = memref.load %arg1[%2] : memref<16xi32, #tpu.memory_space<smem>>
    %c0_i32_0 = arith.constant 0 : i32
    %4 = arith.addi %0, %c0_i32_0 : i32
    %5 = arith.index_cast %4 : i32 to index
    %6 = memref.load %arg2[%5] : memref<16xi32, #tpu.memory_space<smem>>
    %c0_i32_1 = arith.constant 0 : i32
    %c0_i32_2 = arith.constant 0 : i32
    %c0_i32_3 = arith.constant 0 : i32
    %7 = tpu.memref_slice %arg3[%3, %c0_i32_3] : memref<64x128xf32, #tpu.memory_space<any>> -> memref<1x128xf32, #tpu.memory_space<any>>
    %8 = tpu.memref_squeeze %7 : memref<1x128xf32, #tpu.memory_space<any>> -> memref<128xf32, #tpu.memory_space<any>>
    %c0_i32_4 = arith.constant 0 : i32
    %9 = tpu.memref_slice %arg8[%c0_i32_1, %c0_i32_4] : memref<8x128xf32, #tpu.memory_space<vmem>> -> memref<1x128xf32, #tpu.memory_space<vmem>>
    %10 = tpu.memref_squeeze %9 : memref<1x128xf32, #tpu.memory_space<vmem>> -> memref<128xf32, #tpu.memory_space<vmem>>
    %11 = tpu.memref_slice %arg10[%c0_i32_2] : memref<8x!tpu.dma_semaphore, #tpu.memory_space<semaphore_mem>> -> memref<1x!tpu.dma_semaphore, #tpu.memory_space<semaphore_mem>>
    %12 = tpu.memref_squeeze %11 : memref<1x!tpu.dma_semaphore, #tpu.memory_space<semaphore_mem>> -> memref<!tpu.dma_semaphore, #tpu.memory_space<semaphore_mem>>
    tpu.enqueue_dma source(%8 : memref<128xf32, #tpu.memory_space<any>>) target(%10 : memref<128xf32, #tpu.memory_space<vmem>>) target_semaphore(%12 : memref<!tpu.dma_semaphore, #tpu.memory_space<semaphore_mem>>)
    %c0_i32_5 = arith.constant 0 : i32
    %c0_i32_6 = arith.constant 0 : i32
    %c0_i32_7 = arith.constant 0 : i32
    %13 = tpu.memref_slice %arg4[%6, %c0_i32_7] : memref<16x128xf32, #tpu.memory_space<any>> -> memref<1x128xf32, #tpu.memory_space<any>>
    %14 = tpu.memref_squeeze %13 : memref<1x128xf32, #tpu.memory_space<any>> -> memref<128xf32, #tpu.memory_space<any>>
    %c0_i32_8 = arith.constant 0 : i32
    %15 = tpu.memref_slice %arg9[%c0_i32_5, %c0_i32_8] : memref<8x128xf32, #tpu.memory_space<vmem>> -> memref<1x128xf32, #tpu.memory_space<vmem>>
    %16 = tpu.memref_squeeze %15 : memref<1x128xf32, #tpu.memory_space<vmem>> -> memref<128xf32, #tpu.memory_space<vmem>>
    %17 = tpu.memref_slice %arg11[%c0_i32_6] : memref<8x!tpu.dma_semaphore, #tpu.memory_space<semaphore_mem>> -> memref<1x!tpu.dma_semaphore, #tpu.memory_space<semaphore_mem>>
    %18 = tpu.memref_squeeze %17 : memref<1x!tpu.dma_semaphore, #tpu.memory_space<semaphore_mem>> -> memref<!tpu.dma_semaphore, #tpu.memory_space<semaphore_mem>>
    tpu.enqueue_dma source(%14 : memref<128xf32, #tpu.memory_space<any>>) target(%16 : memref<128xf32, #tpu.memory_space<vmem>>) target_semaphore(%18 : memref<!tpu.dma_semaphore, #tpu.memory_space<semaphore_mem>>)
    %c1_i32 = arith.constant 1 : i32
    %19 = arith.addi %0, %c1_i32 : i32
    %20 = arith.index_cast %19 : i32 to index
    %21 = memref.load %arg1[%20] : memref<16xi32, #tpu.memory_space<smem>>
    %c1_i32_9 = arith.constant 1 : i32
    %22 = arith.addi %0, %c1_i32_9 : i32
    %23 = arith.index_cast %22 : i32 to index
    %24 = memref.load %arg2[%23] : memref<16xi32, #tpu.memory_space<smem>>
    %c1_i32_10 = arith.constant 1 : i32
    %c1_i32_11 = arith.constant 1 : i32
    %c0_i32_12 = arith.constant 0 : i32
    %25 = tpu.memref_slice %arg3[%21, %c0_i32_12] : memref<64x128xf32, #tpu.memory_space<any>> -> memref<1x128xf32, #tpu.memory_space<any>>
    %26 = tpu.memref_squeeze %25 : memref<1x128xf32, #tpu.memory_space<any>> -> memref<128xf32, #tpu.memory_space<any>>
    %c0_i32_13 = arith.constant 0 : i32
    %27 = tpu.memref_slice %arg8[%c1_i32_10, %c0_i32_13] : memref<8x128xf32, #tpu.memory_space<vmem>> -> memref<1x128xf32, #tpu.memory_space<vmem>>
    %28 = tpu.memref_squeeze %27 : memref<1x128xf32, #tpu.memory_space<vmem>> -> memref<128xf32, #tpu.memory_space<vmem>>
    %29 = tpu.memref_slice %arg10[%c1_i32_11] : memref<8x!tpu.dma_semaphore, #tpu.memory_space<semaphore_mem>> -> memref<1x!tpu.dma_semaphore, #tpu.memory_space<semaphore_mem>>
    %30 = tpu.memref_squeeze %29 : memref<1x!tpu.dma_semaphore, #tpu.memory_space<semaphore_mem>> -> memref<!tpu.dma_semaphore, #tpu.memory_space<semaphore_mem>>
    tpu.enqueue_dma source(%26 : memref<128xf32, #tpu.memory_space<any>>) target(%28 : memref<128xf32, #tpu.memory_space<vmem>>) target_semaphore(%30 : memref<!tpu.dma_semaphore, #tpu.memory_space<semaphore_mem>>)
    %c1_i32_14 = arith.constant 1 : i32
    %c1_i32_15 = arith.constant 1 : i32
    %c0_i32_16 = arith.constant 0 : i32
    %31 = tpu.memref_slice %arg4[%24, %c0_i32_16] : memref<16x128xf32, #tpu.memory_space<any>> -> memref<1x128xf32, #tpu.memory_space<any>>
    %32 = tpu.memref_squeeze %31 : memref<1x128xf32, #tpu.memory_space<any>> -> memref<128xf32, #tpu.memory_space<any>>
    %c0_i32_17 = arith.constant 0 : i32
    %33 = tpu.memref_slice %arg9[%c1_i32_14, %c0_i32_17] : memref<8x128xf32, #tpu.memory_space<vmem>> -> memref<1x128xf32, #tpu.memory_space<vmem>>
    %34 = tpu.memref_squeeze %33 : memref<1x128xf32, #tpu.memory_space<vmem>> -> memref<128xf32, #tpu.memory_space<vmem>>
    %35 = tpu.memref_slice %arg11[%c1_i32_15] : memref<8x!tpu.dma_semaphore, #tpu.memory_space<semaphore_mem>> -> memref<1x!tpu.dma_semaphore, #tpu.memory_space<semaphore_mem>>
    %36 = tpu.memref_squeeze %35 : memref<1x!tpu.dma_semaphore, #tpu.memory_space<semaphore_mem>> -> memref<!tpu.dma_semaphore, #tpu.memory_space<semaphore_mem>>
    tpu.enqueue_dma source(%32 : memref<128xf32, #tpu.memory_space<any>>) target(%34 : memref<128xf32, #tpu.memory_space<vmem>>) target_semaphore(%36 : memref<!tpu.dma_semaphore, #tpu.memory_space<semaphore_mem>>)
    %c2_i32 = arith.constant 2 : i32
    %37 = arith.addi %0, %c2_i32 : i32
    %38 = arith.index_cast %37 : i32 to index
    %39 = memref.load %arg1[%38] : memref<16xi32, #tpu.memory_space<smem>>
    %c2_i32_18 = arith.constant 2 : i32
    %40 = arith.addi %0, %c2_i32_18 : i32
    %41 = arith.index_cast %40 : i32 to index
    %42 = memref.load %arg2[%41] : memref<16xi32, #tpu.memory_space<smem>>
    %c2_i32_19 = arith.constant 2 : i32
    %c2_i32_20 = arith.constant 2 : i32
    %c0_i32_21 = arith.constant 0 : i32
    %43 = tpu.memref_slice %arg3[%39, %c0_i32_21] : memref<64x128xf32, #tpu.memory_space<any>> -> memref<1x128xf32, #tpu.memory_space<any>>
    %44 = tpu.memref_squeeze %43 : memref<1x128xf32, #tpu.memory_space<any>> -> memref<128xf32, #tpu.memory_space<any>>
    %c0_i32_22 = arith.constant 0 : i32
    %45 = tpu.memref_slice %arg8[%c2_i32_19, %c0_i32_22] : memref<8x128xf32, #tpu.memory_space<vmem>> -> memref<1x128xf32, #tpu.memory_space<vmem>>
    %46 = tpu.memref_squeeze %45 : memref<1x128xf32, #tpu.memory_space<vmem>> -> memref<128xf32, #tpu.memory_space<vmem>>
    %47 = tpu.memref_slice %arg10[%c2_i32_20] : memref<8x!tpu.dma_semaphore, #tpu.memory_space<semaphore_mem>> -> memref<1x!tpu.dma_semaphore, #tpu.memory_space<semaphore_mem>>
    %48 = tpu.memref_squeeze %47 : memref<1x!tpu.dma_semaphore, #tpu.memory_space<semaphore_mem>> -> memref<!tpu.dma_semaphore, #tpu.memory_space<semaphore_mem>>
    tpu.enqueue_dma source(%44 : memref<128xf32, #tpu.memory_space<any>>) target(%46 : memref<128xf32, #tpu.memory_space<vmem>>) target_semaphore(%48 : memref<!tpu.dma_semaphore, #tpu.memory_space<semaphore_mem>>)
    %c2_i32_23 = arith.constant 2 : i32
    %c2_i32_24 = arith.constant 2 : i32
    %c0_i32_25 = arith.constant 0 : i32
    %49 = tpu.memref_slice %arg4[%42, %c0_i32_25] : memref<16x128xf32, #tpu.memory_space<any>> -> memref<1x128xf32, #tpu.memory_space<any>>
    %50 = tpu.memref_squeeze %49 : memref<1x128xf32, #tpu.memory_space<any>> -> memref<128xf32, #tpu.memory_space<any>>
    %c0_i32_26 = arith.constant 0 : i32
    %51 = tpu.memref_slice %arg9[%c2_i32_23, %c0_i32_26] : memref<8x128xf32, #tpu.memory_space<vmem>> -> memref<1x128xf32, #tpu.memory_space<vmem>>
    %52 = tpu.memref_squeeze %51 : memref<1x128xf32, #tpu.memory_space<vmem>> -> memref<128xf32, #tpu.memory_space<vmem>>
    %53 = tpu.memref_slice %arg11[%c2_i32_24] : memref<8x!tpu.dma_semaphore, #tpu.memory_space<semaphore_mem>> -> memref<1x!tpu.dma_semaphore, #tpu.memory_space<semaphore_mem>>
    %54 = tpu.memref_squeeze %53 : memref<1x!tpu.dma_semaphore, #tpu.memory_space<semaphore_mem>> -> memref<!tpu.dma_semaphore, #tpu.memory_space<semaphore_mem>>
    tpu.enqueue_dma source(%50 : memref<128xf32, #tpu.memory_space<any>>) target(%52 : memref<128xf32, #tpu.memory_space<vmem>>) target_semaphore(%54 : memref<!tpu.dma_semaphore, #tpu.memory_space<semaphore_mem>>)
    %c3_i32 = arith.constant 3 : i32
    %55 = arith.addi %0, %c3_i32 : i32
    %56 = arith.index_cast %55 : i32 to index
    %57 = memref.load %arg1[%56] : memref<16xi32, #tpu.memory_space<smem>>
    %c3_i32_27 = arith.constant 3 : i32
    %58 = arith.addi %0, %c3_i32_27 : i32
    %59 = arith.index_cast %58 : i32 to index
    %60 = memref.load %arg2[%59] : memref<16xi32, #tpu.memory_space<smem>>
    %c3_i32_28 = arith.constant 3 : i32
    %c3_i32_29 = arith.constant 3 : i32
    %c0_i32_30 = arith.constant 0 : i32
    %61 = tpu.memref_slice %arg3[%57, %c0_i32_30] : memref<64x128xf32, #tpu.memory_space<any>> -> memref<1x128xf32, #tpu.memory_space<any>>
    %62 = tpu.memref_squeeze %61 : memref<1x128xf32, #tpu.memory_space<any>> -> memref<128xf32, #tpu.memory_space<any>>
    %c0_i32_31 = arith.constant 0 : i32
    %63 = tpu.memref_slice %arg8[%c3_i32_28, %c0_i32_31] : memref<8x128xf32, #tpu.memory_space<vmem>> -> memref<1x128xf32, #tpu.memory_space<vmem>>
    %64 = tpu.memref_squeeze %63 : memref<1x128xf32, #tpu.memory_space<vmem>> -> memref<128xf32, #tpu.memory_space<vmem>>
    %65 = tpu.memref_slice %arg10[%c3_i32_29] : memref<8x!tpu.dma_semaphore, #tpu.memory_space<semaphore_mem>> -> memref<1x!tpu.dma_semaphore, #tpu.memory_space<semaphore_mem>>
    %66 = tpu.memref_squeeze %65 : memref<1x!tpu.dma_semaphore, #tpu.memory_space<semaphore_mem>> -> memref<!tpu.dma_semaphore, #tpu.memory_space<semaphore_mem>>
    tpu.enqueue_dma source(%62 : memref<128xf32, #tpu.memory_space<any>>) target(%64 : memref<128xf32, #tpu.memory_space<vmem>>) target_semaphore(%66 : memref<!tpu.dma_semaphore, #tpu.memory_space<semaphore_mem>>)
    %c3_i32_32 = arith.constant 3 : i32
    %c3_i32_33 = arith.constant 3 : i32
    %c0_i32_34 = arith.constant 0 : i32
    %67 = tpu.memref_slice %arg4[%60, %c0_i32_34] : memref<16x128xf32, #tpu.memory_space<any>> -> memref<1x128xf32, #tpu.memory_space<any>>
    %68 = tpu.memref_squeeze %67 : memref<1x128xf32, #tpu.memory_space<any>> -> memref<128xf32, #tpu.memory_space<any>>
    %c0_i32_35 = arith.constant 0 : i32
    %69 = tpu.memref_slice %arg9[%c3_i32_32, %c0_i32_35] : memref<8x128xf32, #tpu.memory_space<vmem>> -> memref<1x128xf32, #tpu.memory_space<vmem>>
    %70 = tpu.memref_squeeze %69 : memref<1x128xf32, #tpu.memory_space<vmem>> -> memref<128xf32, #tpu.memory_space<vmem>>
    %71 = tpu.memref_slice %arg11[%c3_i32_33] : memref<8x!tpu.dma_semaphore, #tpu.memory_space<semaphore_mem>> -> memref<1x!tpu.dma_semaphore, #tpu.memory_space<semaphore_mem>>
    %72 = tpu.memref_squeeze %71 : memref<1x!tpu.dma_semaphore, #tpu.memory_space<semaphore_mem>> -> memref<!tpu.dma_semaphore, #tpu.memory_space<semaphore_mem>>
    tpu.enqueue_dma source(%68 : memref<128xf32, #tpu.memory_space<any>>) target(%70 : memref<128xf32, #tpu.memory_space<vmem>>) target_semaphore(%72 : memref<!tpu.dma_semaphore, #tpu.memory_space<semaphore_mem>>)
    %c4_i32 = arith.constant 4 : i32
    %73 = arith.addi %0, %c4_i32 : i32
    %74 = arith.index_cast %73 : i32 to index
    %75 = memref.load %arg1[%74] : memref<16xi32, #tpu.memory_space<smem>>
    %c4_i32_36 = arith.constant 4 : i32
    %76 = arith.addi %0, %c4_i32_36 : i32
    %77 = arith.index_cast %76 : i32 to index
    %78 = memref.load %arg2[%77] : memref<16xi32, #tpu.memory_space<smem>>
    %c4_i32_37 = arith.constant 4 : i32
    %c4_i32_38 = arith.constant 4 : i32
    %c0_i32_39 = arith.constant 0 : i32
    %79 = tpu.memref_slice %arg3[%75, %c0_i32_39] : memref<64x128xf32, #tpu.memory_space<any>> -> memref<1x128xf32, #tpu.memory_space<any>>
    %80 = tpu.memref_squeeze %79 : memref<1x128xf32, #tpu.memory_space<any>> -> memref<128xf32, #tpu.memory_space<any>>
    %c0_i32_40 = arith.constant 0 : i32
    %81 = tpu.memref_slice %arg8[%c4_i32_37, %c0_i32_40] : memref<8x128xf32, #tpu.memory_space<vmem>> -> memref<1x128xf32, #tpu.memory_space<vmem>>
    %82 = tpu.memref_squeeze %81 : memref<1x128xf32, #tpu.memory_space<vmem>> -> memref<128xf32, #tpu.memory_space<vmem>>
    %83 = tpu.memref_slice %arg10[%c4_i32_38] : memref<8x!tpu.dma_semaphore, #tpu.memory_space<semaphore_mem>> -> memref<1x!tpu.dma_semaphore, #tpu.memory_space<semaphore_mem>>
    %84 = tpu.memref_squeeze %83 : memref<1x!tpu.dma_semaphore, #tpu.memory_space<semaphore_mem>> -> memref<!tpu.dma_semaphore, #tpu.memory_space<semaphore_mem>>
    tpu.enqueue_dma source(%80 : memref<128xf32, #tpu.memory_space<any>>) target(%82 : memref<128xf32, #tpu.memory_space<vmem>>) target_semaphore(%84 : memref<!tpu.dma_semaphore, #tpu.memory_space<semaphore_mem>>)
    %c4_i32_41 = arith.constant 4 : i32
    %c4_i32_42 = arith.constant 4 : i32
    %c0_i32_43 = arith.constant 0 : i32
    %85 = tpu.memref_slice %arg4[%78, %c0_i32_43] : memref<16x128xf32, #tpu.memory_space<any>> -> memref<1x128xf32, #tpu.memory_space<any>>
    %86 = tpu.memref_squeeze %85 : memref<1x128xf32, #tpu.memory_space<any>> -> memref<128xf32, #tpu.memory_space<any>>
    %c0_i32_44 = arith.constant 0 : i32
    %87 = tpu.memref_slice %arg9[%c4_i32_41, %c0_i32_44] : memref<8x128xf32, #tpu.memory_space<vmem>> -> memref<1x128xf32, #tpu.memory_space<vmem>>
    %88 = tpu.memref_squeeze %87 : memref<1x128xf32, #tpu.memory_space<vmem>> -> memref<128xf32, #tpu.memory_space<vmem>>
    %89 = tpu.memref_slice %arg11[%c4_i32_42] : memref<8x!tpu.dma_semaphore, #tpu.memory_space<semaphore_mem>> -> memref<1x!tpu.dma_semaphore, #tpu.memory_space<semaphore_mem>>
    %90 = tpu.memref_squeeze %89 : memref<1x!tpu.dma_semaphore, #tpu.memory_space<semaphore_mem>> -> memref<!tpu.dma_semaphore, #tpu.memory_space<semaphore_mem>>
    tpu.enqueue_dma source(%86 : memref<128xf32, #tpu.memory_space<any>>) target(%88 : memref<128xf32, #tpu.memory_space<vmem>>) target_semaphore(%90 : memref<!tpu.dma_semaphore, #tpu.memory_space<semaphore_mem>>)
    %c5_i32 = arith.constant 5 : i32
    %91 = arith.addi %0, %c5_i32 : i32
    %92 = arith.index_cast %91 : i32 to index
    %93 = memref.load %arg1[%92] : memref<16xi32, #tpu.memory_space<smem>>
    %c5_i32_45 = arith.constant 5 : i32
    %94 = arith.addi %0, %c5_i32_45 : i32
    %95 = arith.index_cast %94 : i32 to index
    %96 = memref.load %arg2[%95] : memref<16xi32, #tpu.memory_space<smem>>
    %c5_i32_46 = arith.constant 5 : i32
    %c5_i32_47 = arith.constant 5 : i32
    %c0_i32_48 = arith.constant 0 : i32
    %97 = tpu.memref_slice %arg3[%93, %c0_i32_48] : memref<64x128xf32, #tpu.memory_space<any>> -> memref<1x128xf32, #tpu.memory_space<any>>
    %98 = tpu.memref_squeeze %97 : memref<1x128xf32, #tpu.memory_space<any>> -> memref<128xf32, #tpu.memory_space<any>>
    %c0_i32_49 = arith.constant 0 : i32
    %99 = tpu.memref_slice %arg8[%c5_i32_46, %c0_i32_49] : memref<8x128xf32, #tpu.memory_space<vmem>> -> memref<1x128xf32, #tpu.memory_space<vmem>>
    %100 = tpu.memref_squeeze %99 : memref<1x128xf32, #tpu.memory_space<vmem>> -> memref<128xf32, #tpu.memory_space<vmem>>
    %101 = tpu.memref_slice %arg10[%c5_i32_47] : memref<8x!tpu.dma_semaphore, #tpu.memory_space<semaphore_mem>> -> memref<1x!tpu.dma_semaphore, #tpu.memory_space<semaphore_mem>>
    %102 = tpu.memref_squeeze %101 : memref<1x!tpu.dma_semaphore, #tpu.memory_space<semaphore_mem>> -> memref<!tpu.dma_semaphore, #tpu.memory_space<semaphore_mem>>
    tpu.enqueue_dma source(%98 : memref<128xf32, #tpu.memory_space<any>>) target(%100 : memref<128xf32, #tpu.memory_space<vmem>>) target_semaphore(%102 : memref<!tpu.dma_semaphore, #tpu.memory_space<semaphore_mem>>)
    %c5_i32_50 = arith.constant 5 : i32
    %c5_i32_51 = arith.constant 5 : i32
    %c0_i32_52 = arith.constant 0 : i32
    %103 = tpu.memref_slice %arg4[%96, %c0_i32_52] : memref<16x128xf32, #tpu.memory_space<any>> -> memref<1x128xf32, #tpu.memory_space<any>>
    %104 = tpu.memref_squeeze %103 : memref<1x128xf32, #tpu.memory_space<any>> -> memref<128xf32, #tpu.memory_space<any>>
    %c0_i32_53 = arith.constant 0 : i32
    %105 = tpu.memref_slice %arg9[%c5_i32_50, %c0_i32_53] : memref<8x128xf32, #tpu.memory_space<vmem>> -> memref<1x128xf32, #tpu.memory_space<vmem>>
    %106 = tpu.memref_squeeze %105 : memref<1x128xf32, #tpu.memory_space<vmem>> -> memref<128xf32, #tpu.memory_space<vmem>>
    %107 = tpu.memref_slice %arg11[%c5_i32_51] : memref<8x!tpu.dma_semaphore, #tpu.memory_space<semaphore_mem>> -> memref<1x!tpu.dma_semaphore, #tpu.memory_space<semaphore_mem>>
    %108 = tpu.memref_squeeze %107 : memref<1x!tpu.dma_semaphore, #tpu.memory_space<semaphore_mem>> -> memref<!tpu.dma_semaphore, #tpu.memory_space<semaphore_mem>>
    tpu.enqueue_dma source(%104 : memref<128xf32, #tpu.memory_space<any>>) target(%106 : memref<128xf32, #tpu.memory_space<vmem>>) target_semaphore(%108 : memref<!tpu.dma_semaphore, #tpu.memory_space<semaphore_mem>>)
    %c6_i32 = arith.constant 6 : i32
    %109 = arith.addi %0, %c6_i32 : i32
    %110 = arith.index_cast %109 : i32 to index
    %111 = memref.load %arg1[%110] : memref<16xi32, #tpu.memory_space<smem>>
    %c6_i32_54 = arith.constant 6 : i32
    %112 = arith.addi %0, %c6_i32_54 : i32
    %113 = arith.index_cast %112 : i32 to index
    %114 = memref.load %arg2[%113] : memref<16xi32, #tpu.memory_space<smem>>
    %c6_i32_55 = arith.constant 6 : i32
    %c6_i32_56 = arith.constant 6 : i32
    %c0_i32_57 = arith.constant 0 : i32
    %115 = tpu.memref_slice %arg3[%111, %c0_i32_57] : memref<64x128xf32, #tpu.memory_space<any>> -> memref<1x128xf32, #tpu.memory_space<any>>
    %116 = tpu.memref_squeeze %115 : memref<1x128xf32, #tpu.memory_space<any>> -> memref<128xf32, #tpu.memory_space<any>>
    %c0_i32_58 = arith.constant 0 : i32
    %117 = tpu.memref_slice %arg8[%c6_i32_55, %c0_i32_58] : memref<8x128xf32, #tpu.memory_space<vmem>> -> memref<1x128xf32, #tpu.memory_space<vmem>>
    %118 = tpu.memref_squeeze %117 : memref<1x128xf32, #tpu.memory_space<vmem>> -> memref<128xf32, #tpu.memory_space<vmem>>
    %119 = tpu.memref_slice %arg10[%c6_i32_56] : memref<8x!tpu.dma_semaphore, #tpu.memory_space<semaphore_mem>> -> memref<1x!tpu.dma_semaphore, #tpu.memory_space<semaphore_mem>>
    %120 = tpu.memref_squeeze %119 : memref<1x!tpu.dma_semaphore, #tpu.memory_space<semaphore_mem>> -> memref<!tpu.dma_semaphore, #tpu.memory_space<semaphore_mem>>
    tpu.enqueue_dma source(%116 : memref<128xf32, #tpu.memory_space<any>>) target(%118 : memref<128xf32, #tpu.memory_space<vmem>>) target_semaphore(%120 : memref<!tpu.dma_semaphore, #tpu.memory_space<semaphore_mem>>)
    %c6_i32_59 = arith.constant 6 : i32
    %c6_i32_60 = arith.constant 6 : i32
    %c0_i32_61 = arith.constant 0 : i32
    %121 = tpu.memref_slice %arg4[%114, %c0_i32_61] : memref<16x128xf32, #tpu.memory_space<any>> -> memref<1x128xf32, #tpu.memory_space<any>>
    %122 = tpu.memref_squeeze %121 : memref<1x128xf32, #tpu.memory_space<any>> -> memref<128xf32, #tpu.memory_space<any>>
    %c0_i32_62 = arith.constant 0 : i32
    %123 = tpu.memref_slice %arg9[%c6_i32_59, %c0_i32_62] : memref<8x128xf32, #tpu.memory_space<vmem>> -> memref<1x128xf32, #tpu.memory_space<vmem>>
    %124 = tpu.memref_squeeze %123 : memref<1x128xf32, #tpu.memory_space<vmem>> -> memref<128xf32, #tpu.memory_space<vmem>>
    %125 = tpu.memref_slice %arg11[%c6_i32_60] : memref<8x!tpu.dma_semaphore, #tpu.memory_space<semaphore_mem>> -> memref<1x!tpu.dma_semaphore, #tpu.memory_space<semaphore_mem>>
    %126 = tpu.memref_squeeze %125 : memref<1x!tpu.dma_semaphore, #tpu.memory_space<semaphore_mem>> -> memref<!tpu.dma_semaphore, #tpu.memory_space<semaphore_mem>>
    tpu.enqueue_dma source(%122 : memref<128xf32, #tpu.memory_space<any>>) target(%124 : memref<128xf32, #tpu.memory_space<vmem>>) target_semaphore(%126 : memref<!tpu.dma_semaphore, #tpu.memory_space<semaphore_mem>>)
    %c7_i32 = arith.constant 7 : i32
    %127 = arith.addi %0, %c7_i32 : i32
    %128 = arith.index_cast %127 : i32 to index
    %129 = memref.load %arg1[%128] : memref<16xi32, #tpu.memory_space<smem>>
    %c7_i32_63 = arith.constant 7 : i32
    %130 = arith.addi %0, %c7_i32_63 : i32
    %131 = arith.index_cast %130 : i32 to index
    %132 = memref.load %arg2[%131] : memref<16xi32, #tpu.memory_space<smem>>
    %c7_i32_64 = arith.constant 7 : i32
    %c7_i32_65 = arith.constant 7 : i32
    %c0_i32_66 = arith.constant 0 : i32
    %133 = tpu.memref_slice %arg3[%129, %c0_i32_66] : memref<64x128xf32, #tpu.memory_space<any>> -> memref<1x128xf32, #tpu.memory_space<any>>
    %134 = tpu.memref_squeeze %133 : memref<1x128xf32, #tpu.memory_space<any>> -> memref<128xf32, #tpu.memory_space<any>>
    %c0_i32_67 = arith.constant 0 : i32
    %135 = tpu.memref_slice %arg8[%c7_i32_64, %c0_i32_67] : memref<8x128xf32, #tpu.memory_space<vmem>> -> memref<1x128xf32, #tpu.memory_space<vmem>>
    %136 = tpu.memref_squeeze %135 : memref<1x128xf32, #tpu.memory_space<vmem>> -> memref<128xf32, #tpu.memory_space<vmem>>
    %137 = tpu.memref_slice %arg10[%c7_i32_65] : memref<8x!tpu.dma_semaphore, #tpu.memory_space<semaphore_mem>> -> memref<1x!tpu.dma_semaphore, #tpu.memory_space<semaphore_mem>>
    %138 = tpu.memref_squeeze %137 : memref<1x!tpu.dma_semaphore, #tpu.memory_space<semaphore_mem>> -> memref<!tpu.dma_semaphore, #tpu.memory_space<semaphore_mem>>
    tpu.enqueue_dma source(%134 : memref<128xf32, #tpu.memory_space<any>>) target(%136 : memref<128xf32, #tpu.memory_space<vmem>>) target_semaphore(%138 : memref<!tpu.dma_semaphore, #tpu.memory_space<semaphore_mem>>)
    %c7_i32_68 = arith.constant 7 : i32
    %c7_i32_69 = arith.constant 7 : i32
    %c0_i32_70 = arith.constant 0 : i32
    %139 = tpu.memref_slice %arg4[%132, %c0_i32_70] : memref<16x128xf32, #tpu.memory_space<any>> -> memref<1x128xf32, #tpu.memory_space<any>>
    %140 = tpu.memref_squeeze %139 : memref<1x128xf32, #tpu.memory_space<any>> -> memref<128xf32, #tpu.memory_space<any>>
    %c0_i32_71 = arith.constant 0 : i32
    %141 = tpu.memref_slice %arg9[%c7_i32_68, %c0_i32_71] : memref<8x128xf32, #tpu.memory_space<vmem>> -> memref<1x128xf32, #tpu.memory_space<vmem>>
    %142 = tpu.memref_squeeze %141 : memref<1x128xf32, #tpu.memory_space<vmem>> -> memref<128xf32, #tpu.memory_space<vmem>>
    %143 = tpu.memref_slice %arg11[%c7_i32_69] : memref<8x!tpu.dma_semaphore, #tpu.memory_space<semaphore_mem>> -> memref<1x!tpu.dma_semaphore, #tpu.memory_space<semaphore_mem>>
    %144 = tpu.memref_squeeze %143 : memref<1x!tpu.dma_semaphore, #tpu.memory_space<semaphore_mem>> -> memref<!tpu.dma_semaphore, #tpu.memory_space<semaphore_mem>>
    tpu.enqueue_dma source(%140 : memref<128xf32, #tpu.memory_space<any>>) target(%142 : memref<128xf32, #tpu.memory_space<vmem>>) target_semaphore(%144 : memref<!tpu.dma_semaphore, #tpu.memory_space<semaphore_mem>>)
    %c0_i32_72 = arith.constant 0 : i32
    %c0_i32_73 = arith.constant 0 : i32
    %c0_i32_74 = arith.constant 0 : i32
    %145 = tpu.memref_slice %arg3[%3, %c0_i32_74] : memref<64x128xf32, #tpu.memory_space<any>> -> memref<1x128xf32, #tpu.memory_space<any>>
    %146 = tpu.memref_squeeze %145 : memref<1x128xf32, #tpu.memory_space<any>> -> memref<128xf32, #tpu.memory_space<any>>
    %c0_i32_75 = arith.constant 0 : i32
    %147 = tpu.memref_slice %arg8[%c0_i32_72, %c0_i32_75] : memref<8x128xf32, #tpu.memory_space<vmem>> -> memref<1x128xf32, #tpu.memory_space<vmem>>
    %148 = tpu.memref_squeeze %147 : memref<1x128xf32, #tpu.memory_space<vmem>> -> memref<128xf32, #tpu.memory_space<vmem>>
    %149 = tpu.memref_slice %arg10[%c0_i32_73] : memref<8x!tpu.dma_semaphore, #tpu.memory_space<semaphore_mem>> -> memref<1x!tpu.dma_semaphore, #tpu.memory_space<semaphore_mem>>
    %150 = tpu.memref_squeeze %149 : memref<1x!tpu.dma_semaphore, #tpu.memory_space<semaphore_mem>> -> memref<!tpu.dma_semaphore, #tpu.memory_space<semaphore_mem>>
    tpu.wait_dma2 semaphore(%150 : memref<!tpu.dma_semaphore, #tpu.memory_space<semaphore_mem>>) src(%146 : memref<128xf32, #tpu.memory_space<any>>) dst(%148 : memref<128xf32, #tpu.memory_space<vmem>>)
    %c0_i32_76 = arith.constant 0 : i32
    %c0_i32_77 = arith.constant 0 : i32
    %c0_i32_78 = arith.constant 0 : i32
    %151 = tpu.memref_slice %arg4[%6, %c0_i32_78] : memref<16x128xf32, #tpu.memory_space<any>> -> memref<1x128xf32, #tpu.memory_space<any>>
    %152 = tpu.memref_squeeze %151 : memref<1x128xf32, #tpu.memory_space<any>> -> memref<128xf32, #tpu.memory_space<any>>
    %c0_i32_79 = arith.constant 0 : i32
    %153 = tpu.memref_slice %arg9[%c0_i32_76, %c0_i32_79] : memref<8x128xf32, #tpu.memory_space<vmem>> -> memref<1x128xf32, #tpu.memory_space<vmem>>
    %154 = tpu.memref_squeeze %153 : memref<1x128xf32, #tpu.memory_space<vmem>> -> memref<128xf32, #tpu.memory_space<vmem>>
    %155 = tpu.memref_slice %arg11[%c0_i32_77] : memref<8x!tpu.dma_semaphore, #tpu.memory_space<semaphore_mem>> -> memref<1x!tpu.dma_semaphore, #tpu.memory_space<semaphore_mem>>
    %156 = tpu.memref_squeeze %155 : memref<1x!tpu.dma_semaphore, #tpu.memory_space<semaphore_mem>> -> memref<!tpu.dma_semaphore, #tpu.memory_space<semaphore_mem>>
    tpu.wait_dma2 semaphore(%156 : memref<!tpu.dma_semaphore, #tpu.memory_space<semaphore_mem>>) src(%152 : memref<128xf32, #tpu.memory_space<any>>) dst(%154 : memref<128xf32, #tpu.memory_space<vmem>>)
    %c1_i32_80 = arith.constant 1 : i32
    %c1_i32_81 = arith.constant 1 : i32
    %c0_i32_82 = arith.constant 0 : i32
    %157 = tpu.memref_slice %arg3[%21, %c0_i32_82] : memref<64x128xf32, #tpu.memory_space<any>> -> memref<1x128xf32, #tpu.memory_space<any>>
    %158 = tpu.memref_squeeze %157 : memref<1x128xf32, #tpu.memory_space<any>> -> memref<128xf32, #tpu.memory_space<any>>
    %c0_i32_83 = arith.constant 0 : i32
    %159 = tpu.memref_slice %arg8[%c1_i32_80, %c0_i32_83] : memref<8x128xf32, #tpu.memory_space<vmem>> -> memref<1x128xf32, #tpu.memory_space<vmem>>
    %160 = tpu.memref_squeeze %159 : memref<1x128xf32, #tpu.memory_space<vmem>> -> memref<128xf32, #tpu.memory_space<vmem>>
    %161 = tpu.memref_slice %arg10[%c1_i32_81] : memref<8x!tpu.dma_semaphore, #tpu.memory_space<semaphore_mem>> -> memref<1x!tpu.dma_semaphore, #tpu.memory_space<semaphore_mem>>
    %162 = tpu.memref_squeeze %161 : memref<1x!tpu.dma_semaphore, #tpu.memory_space<semaphore_mem>> -> memref<!tpu.dma_semaphore, #tpu.memory_space<semaphore_mem>>
    tpu.wait_dma2 semaphore(%162 : memref<!tpu.dma_semaphore, #tpu.memory_space<semaphore_mem>>) src(%158 : memref<128xf32, #tpu.memory_space<any>>) dst(%160 : memref<128xf32, #tpu.memory_space<vmem>>)
    %c1_i32_84 = arith.constant 1 : i32
    %c1_i32_85 = arith.constant 1 : i32
    %c0_i32_86 = arith.constant 0 : i32
    %163 = tpu.memref_slice %arg4[%24, %c0_i32_86] : memref<16x128xf32, #tpu.memory_space<any>> -> memref<1x128xf32, #tpu.memory_space<any>>
    %164 = tpu.memref_squeeze %163 : memref<1x128xf32, #tpu.memory_space<any>> -> memref<128xf32, #tpu.memory_space<any>>
    %c0_i32_87 = arith.constant 0 : i32
    %165 = tpu.memref_slice %arg9[%c1_i32_84, %c0_i32_87] : memref<8x128xf32, #tpu.memory_space<vmem>> -> memref<1x128xf32, #tpu.memory_space<vmem>>
    %166 = tpu.memref_squeeze %165 : memref<1x128xf32, #tpu.memory_space<vmem>> -> memref<128xf32, #tpu.memory_space<vmem>>
    %167 = tpu.memref_slice %arg11[%c1_i32_85] : memref<8x!tpu.dma_semaphore, #tpu.memory_space<semaphore_mem>> -> memref<1x!tpu.dma_semaphore, #tpu.memory_space<semaphore_mem>>
    %168 = tpu.memref_squeeze %167 : memref<1x!tpu.dma_semaphore, #tpu.memory_space<semaphore_mem>> -> memref<!tpu.dma_semaphore, #tpu.memory_space<semaphore_mem>>
    tpu.wait_dma2 semaphore(%168 : memref<!tpu.dma_semaphore, #tpu.memory_space<semaphore_mem>>) src(%164 : memref<128xf32, #tpu.memory_space<any>>) dst(%166 : memref<128xf32, #tpu.memory_space<vmem>>)
    %c2_i32_88 = arith.constant 2 : i32
    %c2_i32_89 = arith.constant 2 : i32
    %c0_i32_90 = arith.constant 0 : i32
    %169 = tpu.memref_slice %arg3[%39, %c0_i32_90] : memref<64x128xf32, #tpu.memory_space<any>> -> memref<1x128xf32, #tpu.memory_space<any>>
    %170 = tpu.memref_squeeze %169 : memref<1x128xf32, #tpu.memory_space<any>> -> memref<128xf32, #tpu.memory_space<any>>
    %c0_i32_91 = arith.constant 0 : i32
    %171 = tpu.memref_slice %arg8[%c2_i32_88, %c0_i32_91] : memref<8x128xf32, #tpu.memory_space<vmem>> -> memref<1x128xf32, #tpu.memory_space<vmem>>
    %172 = tpu.memref_squeeze %171 : memref<1x128xf32, #tpu.memory_space<vmem>> -> memref<128xf32, #tpu.memory_space<vmem>>
    %173 = tpu.memref_slice %arg10[%c2_i32_89] : memref<8x!tpu.dma_semaphore, #tpu.memory_space<semaphore_mem>> -> memref<1x!tpu.dma_semaphore, #tpu.memory_space<semaphore_mem>>
    %174 = tpu.memref_squeeze %173 : memref<1x!tpu.dma_semaphore, #tpu.memory_space<semaphore_mem>> -> memref<!tpu.dma_semaphore, #tpu.memory_space<semaphore_mem>>
    tpu.wait_dma2 semaphore(%174 : memref<!tpu.dma_semaphore, #tpu.memory_space<semaphore_mem>>) src(%170 : memref<128xf32, #tpu.memory_space<any>>) dst(%172 : memref<128xf32, #tpu.memory_space<vmem>>)
    %c2_i32_92 = arith.constant 2 : i32
    %c2_i32_93 = arith.constant 2 : i32
    %c0_i32_94 = arith.constant 0 : i32
    %175 = tpu.memref_slice %arg4[%42, %c0_i32_94] : memref<16x128xf32, #tpu.memory_space<any>> -> memref<1x128xf32, #tpu.memory_space<any>>
    %176 = tpu.memref_squeeze %175 : memref<1x128xf32, #tpu.memory_space<any>> -> memref<128xf32, #tpu.memory_space<any>>
    %c0_i32_95 = arith.constant 0 : i32
    %177 = tpu.memref_slice %arg9[%c2_i32_92, %c0_i32_95] : memref<8x128xf32, #tpu.memory_space<vmem>> -> memref<1x128xf32, #tpu.memory_space<vmem>>
    %178 = tpu.memref_squeeze %177 : memref<1x128xf32, #tpu.memory_space<vmem>> -> memref<128xf32, #tpu.memory_space<vmem>>
    %179 = tpu.memref_slice %arg11[%c2_i32_93] : memref<8x!tpu.dma_semaphore, #tpu.memory_space<semaphore_mem>> -> memref<1x!tpu.dma_semaphore, #tpu.memory_space<semaphore_mem>>
    %180 = tpu.memref_squeeze %179 : memref<1x!tpu.dma_semaphore, #tpu.memory_space<semaphore_mem>> -> memref<!tpu.dma_semaphore, #tpu.memory_space<semaphore_mem>>
    tpu.wait_dma2 semaphore(%180 : memref<!tpu.dma_semaphore, #tpu.memory_space<semaphore_mem>>) src(%176 : memref<128xf32, #tpu.memory_space<any>>) dst(%178 : memref<128xf32, #tpu.memory_space<vmem>>)
    %c3_i32_96 = arith.constant 3 : i32
    %c3_i32_97 = arith.constant 3 : i32
    %c0_i32_98 = arith.constant 0 : i32
    %181 = tpu.memref_slice %arg3[%57, %c0_i32_98] : memref<64x128xf32, #tpu.memory_space<any>> -> memref<1x128xf32, #tpu.memory_space<any>>
    %182 = tpu.memref_squeeze %181 : memref<1x128xf32, #tpu.memory_space<any>> -> memref<128xf32, #tpu.memory_space<any>>
    %c0_i32_99 = arith.constant 0 : i32
    %183 = tpu.memref_slice %arg8[%c3_i32_96, %c0_i32_99] : memref<8x128xf32, #tpu.memory_space<vmem>> -> memref<1x128xf32, #tpu.memory_space<vmem>>
    %184 = tpu.memref_squeeze %183 : memref<1x128xf32, #tpu.memory_space<vmem>> -> memref<128xf32, #tpu.memory_space<vmem>>
    %185 = tpu.memref_slice %arg10[%c3_i32_97] : memref<8x!tpu.dma_semaphore, #tpu.memory_space<semaphore_mem>> -> memref<1x!tpu.dma_semaphore, #tpu.memory_space<semaphore_mem>>
    %186 = tpu.memref_squeeze %185 : memref<1x!tpu.dma_semaphore, #tpu.memory_space<semaphore_mem>> -> memref<!tpu.dma_semaphore, #tpu.memory_space<semaphore_mem>>
    tpu.wait_dma2 semaphore(%186 : memref<!tpu.dma_semaphore, #tpu.memory_space<semaphore_mem>>) src(%182 : memref<128xf32, #tpu.memory_space<any>>) dst(%184 : memref<128xf32, #tpu.memory_space<vmem>>)
    %c3_i32_100 = arith.constant 3 : i32
    %c3_i32_101 = arith.constant 3 : i32
    %c0_i32_102 = arith.constant 0 : i32
    %187 = tpu.memref_slice %arg4[%60, %c0_i32_102] : memref<16x128xf32, #tpu.memory_space<any>> -> memref<1x128xf32, #tpu.memory_space<any>>
    %188 = tpu.memref_squeeze %187 : memref<1x128xf32, #tpu.memory_space<any>> -> memref<128xf32, #tpu.memory_space<any>>
    %c0_i32_103 = arith.constant 0 : i32
    %189 = tpu.memref_slice %arg9[%c3_i32_100, %c0_i32_103] : memref<8x128xf32, #tpu.memory_space<vmem>> -> memref<1x128xf32, #tpu.memory_space<vmem>>
    %190 = tpu.memref_squeeze %189 : memref<1x128xf32, #tpu.memory_space<vmem>> -> memref<128xf32, #tpu.memory_space<vmem>>
    %191 = tpu.memref_slice %arg11[%c3_i32_101] : memref<8x!tpu.dma_semaphore, #tpu.memory_space<semaphore_mem>> -> memref<1x!tpu.dma_semaphore, #tpu.memory_space<semaphore_mem>>
    %192 = tpu.memref_squeeze %191 : memref<1x!tpu.dma_semaphore, #tpu.memory_space<semaphore_mem>> -> memref<!tpu.dma_semaphore, #tpu.memory_space<semaphore_mem>>
    tpu.wait_dma2 semaphore(%192 : memref<!tpu.dma_semaphore, #tpu.memory_space<semaphore_mem>>) src(%188 : memref<128xf32, #tpu.memory_space<any>>) dst(%190 : memref<128xf32, #tpu.memory_space<vmem>>)
    %c4_i32_104 = arith.constant 4 : i32
    %c4_i32_105 = arith.constant 4 : i32
    %c0_i32_106 = arith.constant 0 : i32
    %193 = tpu.memref_slice %arg3[%75, %c0_i32_106] : memref<64x128xf32, #tpu.memory_space<any>> -> memref<1x128xf32, #tpu.memory_space<any>>
    %194 = tpu.memref_squeeze %193 : memref<1x128xf32, #tpu.memory_space<any>> -> memref<128xf32, #tpu.memory_space<any>>
    %c0_i32_107 = arith.constant 0 : i32
    %195 = tpu.memref_slice %arg8[%c4_i32_104, %c0_i32_107] : memref<8x128xf32, #tpu.memory_space<vmem>> -> memref<1x128xf32, #tpu.memory_space<vmem>>
    %196 = tpu.memref_squeeze %195 : memref<1x128xf32, #tpu.memory_space<vmem>> -> memref<128xf32, #tpu.memory_space<vmem>>
    %197 = tpu.memref_slice %arg10[%c4_i32_105] : memref<8x!tpu.dma_semaphore, #tpu.memory_space<semaphore_mem>> -> memref<1x!tpu.dma_semaphore, #tpu.memory_space<semaphore_mem>>
    %198 = tpu.memref_squeeze %197 : memref<1x!tpu.dma_semaphore, #tpu.memory_space<semaphore_mem>> -> memref<!tpu.dma_semaphore, #tpu.memory_space<semaphore_mem>>
    tpu.wait_dma2 semaphore(%198 : memref<!tpu.dma_semaphore, #tpu.memory_space<semaphore_mem>>) src(%194 : memref<128xf32, #tpu.memory_space<any>>) dst(%196 : memref<128xf32, #tpu.memory_space<vmem>>)
    %c4_i32_108 = arith.constant 4 : i32
    %c4_i32_109 = arith.constant 4 : i32
    %c0_i32_110 = arith.constant 0 : i32
    %199 = tpu.memref_slice %arg4[%78, %c0_i32_110] : memref<16x128xf32, #tpu.memory_space<any>> -> memref<1x128xf32, #tpu.memory_space<any>>
    %200 = tpu.memref_squeeze %199 : memref<1x128xf32, #tpu.memory_space<any>> -> memref<128xf32, #tpu.memory_space<any>>
    %c0_i32_111 = arith.constant 0 : i32
    %201 = tpu.memref_slice %arg9[%c4_i32_108, %c0_i32_111] : memref<8x128xf32, #tpu.memory_space<vmem>> -> memref<1x128xf32, #tpu.memory_space<vmem>>
    %202 = tpu.memref_squeeze %201 : memref<1x128xf32, #tpu.memory_space<vmem>> -> memref<128xf32, #tpu.memory_space<vmem>>
    %203 = tpu.memref_slice %arg11[%c4_i32_109] : memref<8x!tpu.dma_semaphore, #tpu.memory_space<semaphore_mem>> -> memref<1x!tpu.dma_semaphore, #tpu.memory_space<semaphore_mem>>
    %204 = tpu.memref_squeeze %203 : memref<1x!tpu.dma_semaphore, #tpu.memory_space<semaphore_mem>> -> memref<!tpu.dma_semaphore, #tpu.memory_space<semaphore_mem>>
    tpu.wait_dma2 semaphore(%204 : memref<!tpu.dma_semaphore, #tpu.memory_space<semaphore_mem>>) src(%200 : memref<128xf32, #tpu.memory_space<any>>) dst(%202 : memref<128xf32, #tpu.memory_space<vmem>>)
    %c5_i32_112 = arith.constant 5 : i32
    %c5_i32_113 = arith.constant 5 : i32
    %c0_i32_114 = arith.constant 0 : i32
    %205 = tpu.memref_slice %arg3[%93, %c0_i32_114] : memref<64x128xf32, #tpu.memory_space<any>> -> memref<1x128xf32, #tpu.memory_space<any>>
    %206 = tpu.memref_squeeze %205 : memref<1x128xf32, #tpu.memory_space<any>> -> memref<128xf32, #tpu.memory_space<any>>
    %c0_i32_115 = arith.constant 0 : i32
    %207 = tpu.memref_slice %arg8[%c5_i32_112, %c0_i32_115] : memref<8x128xf32, #tpu.memory_space<vmem>> -> memref<1x128xf32, #tpu.memory_space<vmem>>
    %208 = tpu.memref_squeeze %207 : memref<1x128xf32, #tpu.memory_space<vmem>> -> memref<128xf32, #tpu.memory_space<vmem>>
    %209 = tpu.memref_slice %arg10[%c5_i32_113] : memref<8x!tpu.dma_semaphore, #tpu.memory_space<semaphore_mem>> -> memref<1x!tpu.dma_semaphore, #tpu.memory_space<semaphore_mem>>
    %210 = tpu.memref_squeeze %209 : memref<1x!tpu.dma_semaphore, #tpu.memory_space<semaphore_mem>> -> memref<!tpu.dma_semaphore, #tpu.memory_space<semaphore_mem>>
    tpu.wait_dma2 semaphore(%210 : memref<!tpu.dma_semaphore, #tpu.memory_space<semaphore_mem>>) src(%206 : memref<128xf32, #tpu.memory_space<any>>) dst(%208 : memref<128xf32, #tpu.memory_space<vmem>>)
    %c5_i32_116 = arith.constant 5 : i32
    %c5_i32_117 = arith.constant 5 : i32
    %c0_i32_118 = arith.constant 0 : i32
    %211 = tpu.memref_slice %arg4[%96, %c0_i32_118] : memref<16x128xf32, #tpu.memory_space<any>> -> memref<1x128xf32, #tpu.memory_space<any>>
    %212 = tpu.memref_squeeze %211 : memref<1x128xf32, #tpu.memory_space<any>> -> memref<128xf32, #tpu.memory_space<any>>
    %c0_i32_119 = arith.constant 0 : i32
    %213 = tpu.memref_slice %arg9[%c5_i32_116, %c0_i32_119] : memref<8x128xf32, #tpu.memory_space<vmem>> -> memref<1x128xf32, #tpu.memory_space<vmem>>
    %214 = tpu.memref_squeeze %213 : memref<1x128xf32, #tpu.memory_space<vmem>> -> memref<128xf32, #tpu.memory_space<vmem>>
    %215 = tpu.memref_slice %arg11[%c5_i32_117] : memref<8x!tpu.dma_semaphore, #tpu.memory_space<semaphore_mem>> -> memref<1x!tpu.dma_semaphore, #tpu.memory_space<semaphore_mem>>
    %216 = tpu.memref_squeeze %215 : memref<1x!tpu.dma_semaphore, #tpu.memory_space<semaphore_mem>> -> memref<!tpu.dma_semaphore, #tpu.memory_space<semaphore_mem>>
    tpu.wait_dma2 semaphore(%216 : memref<!tpu.dma_semaphore, #tpu.memory_space<semaphore_mem>>) src(%212 : memref<128xf32, #tpu.memory_space<any>>) dst(%214 : memref<128xf32, #tpu.memory_space<vmem>>)
    %c6_i32_120 = arith.constant 6 : i32
    %c6_i32_121 = arith.constant 6 : i32
    %c0_i32_122 = arith.constant 0 : i32
    %217 = tpu.memref_slice %arg3[%111, %c0_i32_122] : memref<64x128xf32, #tpu.memory_space<any>> -> memref<1x128xf32, #tpu.memory_space<any>>
    %218 = tpu.memref_squeeze %217 : memref<1x128xf32, #tpu.memory_space<any>> -> memref<128xf32, #tpu.memory_space<any>>
    %c0_i32_123 = arith.constant 0 : i32
    %219 = tpu.memref_slice %arg8[%c6_i32_120, %c0_i32_123] : memref<8x128xf32, #tpu.memory_space<vmem>> -> memref<1x128xf32, #tpu.memory_space<vmem>>
    %220 = tpu.memref_squeeze %219 : memref<1x128xf32, #tpu.memory_space<vmem>> -> memref<128xf32, #tpu.memory_space<vmem>>
    %221 = tpu.memref_slice %arg10[%c6_i32_121] : memref<8x!tpu.dma_semaphore, #tpu.memory_space<semaphore_mem>> -> memref<1x!tpu.dma_semaphore, #tpu.memory_space<semaphore_mem>>
    %222 = tpu.memref_squeeze %221 : memref<1x!tpu.dma_semaphore, #tpu.memory_space<semaphore_mem>> -> memref<!tpu.dma_semaphore, #tpu.memory_space<semaphore_mem>>
    tpu.wait_dma2 semaphore(%222 : memref<!tpu.dma_semaphore, #tpu.memory_space<semaphore_mem>>) src(%218 : memref<128xf32, #tpu.memory_space<any>>) dst(%220 : memref<128xf32, #tpu.memory_space<vmem>>)
    %c6_i32_124 = arith.constant 6 : i32
    %c6_i32_125 = arith.constant 6 : i32
    %c0_i32_126 = arith.constant 0 : i32
    %223 = tpu.memref_slice %arg4[%114, %c0_i32_126] : memref<16x128xf32, #tpu.memory_space<any>> -> memref<1x128xf32, #tpu.memory_space<any>>
    %224 = tpu.memref_squeeze %223 : memref<1x128xf32, #tpu.memory_space<any>> -> memref<128xf32, #tpu.memory_space<any>>
    %c0_i32_127 = arith.constant 0 : i32
    %225 = tpu.memref_slice %arg9[%c6_i32_124, %c0_i32_127] : memref<8x128xf32, #tpu.memory_space<vmem>> -> memref<1x128xf32, #tpu.memory_space<vmem>>
    %226 = tpu.memref_squeeze %225 : memref<1x128xf32, #tpu.memory_space<vmem>> -> memref<128xf32, #tpu.memory_space<vmem>>
    %227 = tpu.memref_slice %arg11[%c6_i32_125] : memref<8x!tpu.dma_semaphore, #tpu.memory_space<semaphore_mem>> -> memref<1x!tpu.dma_semaphore, #tpu.memory_space<semaphore_mem>>
    %228 = tpu.memref_squeeze %227 : memref<1x!tpu.dma_semaphore, #tpu.memory_space<semaphore_mem>> -> memref<!tpu.dma_semaphore, #tpu.memory_space<semaphore_mem>>
    tpu.wait_dma2 semaphore(%228 : memref<!tpu.dma_semaphore, #tpu.memory_space<semaphore_mem>>) src(%224 : memref<128xf32, #tpu.memory_space<any>>) dst(%226 : memref<128xf32, #tpu.memory_space<vmem>>)
    %c7_i32_128 = arith.constant 7 : i32
    %c7_i32_129 = arith.constant 7 : i32
    %c0_i32_130 = arith.constant 0 : i32
    %229 = tpu.memref_slice %arg3[%129, %c0_i32_130] : memref<64x128xf32, #tpu.memory_space<any>> -> memref<1x128xf32, #tpu.memory_space<any>>
    %230 = tpu.memref_squeeze %229 : memref<1x128xf32, #tpu.memory_space<any>> -> memref<128xf32, #tpu.memory_space<any>>
    %c0_i32_131 = arith.constant 0 : i32
    %231 = tpu.memref_slice %arg8[%c7_i32_128, %c0_i32_131] : memref<8x128xf32, #tpu.memory_space<vmem>> -> memref<1x128xf32, #tpu.memory_space<vmem>>
    %232 = tpu.memref_squeeze %231 : memref<1x128xf32, #tpu.memory_space<vmem>> -> memref<128xf32, #tpu.memory_space<vmem>>
    %233 = tpu.memref_slice %arg10[%c7_i32_129] : memref<8x!tpu.dma_semaphore, #tpu.memory_space<semaphore_mem>> -> memref<1x!tpu.dma_semaphore, #tpu.memory_space<semaphore_mem>>
    %234 = tpu.memref_squeeze %233 : memref<1x!tpu.dma_semaphore, #tpu.memory_space<semaphore_mem>> -> memref<!tpu.dma_semaphore, #tpu.memory_space<semaphore_mem>>
    tpu.wait_dma2 semaphore(%234 : memref<!tpu.dma_semaphore, #tpu.memory_space<semaphore_mem>>) src(%230 : memref<128xf32, #tpu.memory_space<any>>) dst(%232 : memref<128xf32, #tpu.memory_space<vmem>>)
    %c7_i32_132 = arith.constant 7 : i32
    %c7_i32_133 = arith.constant 7 : i32
    %c0_i32_134 = arith.constant 0 : i32
    %235 = tpu.memref_slice %arg4[%132, %c0_i32_134] : memref<16x128xf32, #tpu.memory_space<any>> -> memref<1x128xf32, #tpu.memory_space<any>>
    %236 = tpu.memref_squeeze %235 : memref<1x128xf32, #tpu.memory_space<any>> -> memref<128xf32, #tpu.memory_space<any>>
    %c0_i32_135 = arith.constant 0 : i32
    %237 = tpu.memref_slice %arg9[%c7_i32_132, %c0_i32_135] : memref<8x128xf32, #tpu.memory_space<vmem>> -> memref<1x128xf32, #tpu.memory_space<vmem>>
    %238 = tpu.memref_squeeze %237 : memref<1x128xf32, #tpu.memory_space<vmem>> -> memref<128xf32, #tpu.memory_space<vmem>>
    %239 = tpu.memref_slice %arg11[%c7_i32_133] : memref<8x!tpu.dma_semaphore, #tpu.memory_space<semaphore_mem>> -> memref<1x!tpu.dma_semaphore, #tpu.memory_space<semaphore_mem>>
    %240 = tpu.memref_squeeze %239 : memref<1x!tpu.dma_semaphore, #tpu.memory_space<semaphore_mem>> -> memref<!tpu.dma_semaphore, #tpu.memory_space<semaphore_mem>>
    tpu.wait_dma2 semaphore(%240 : memref<!tpu.dma_semaphore, #tpu.memory_space<semaphore_mem>>) src(%236 : memref<128xf32, #tpu.memory_space<any>>) dst(%238 : memref<128xf32, #tpu.memory_space<vmem>>)
    %c0 = arith.constant 0 : index
    %c0_136 = arith.constant 0 : index
    %241 = vector.load %arg8[%c0, %c0_136] : memref<8x128xf32, #tpu.memory_space<vmem>>, vector<8x128xf32>
    %c0_137 = arith.constant 0 : index
    %c0_138 = arith.constant 0 : index
    %242 = vector.load %arg9[%c0_137, %c0_138] : memref<8x128xf32, #tpu.memory_space<vmem>>, vector<8x128xf32>
    %243 = arith.addf %241, %242 : vector<8x128xf32>
    %cst = arith.constant dense<0.000000e+00> : vector<8xf32>
    %244 = vector.multi_reduction <add>, %243, %cst [1] : vector<8x128xf32> to vector<8xf32>
    %245 = vector.shape_cast %244 : vector<8xf32> to vector<8x1xf32>
    %cst_139 = arith.constant 1.280000e+02 : f32
    %246 = vector.broadcast %cst_139 : f32 to vector<8x1xf32>
    %247 = arith.divf %245, %246 : vector<8x1xf32>
    %248 = vector.broadcast %247 : vector<8x1xf32> to vector<8x128xf32>
    %249 = arith.subf %243, %248 : vector<8x128xf32>
    %250 = arith.mulf %249, %249 : vector<8x128xf32>
    %cst_140 = arith.constant dense<0.000000e+00> : vector<8xf32>
    %251 = vector.multi_reduction <add>, %250, %cst_140 [1] : vector<8x128xf32> to vector<8xf32>
    %252 = vector.shape_cast %251 : vector<8xf32> to vector<8x1xf32>
    %cst_141 = arith.constant 1.280000e+02 : f32
    %253 = vector.broadcast %cst_141 : f32 to vector<8x1xf32>
    %254 = arith.divf %252, %253 : vector<8x1xf32>
    %255 = vector.broadcast %247 : vector<8x1xf32> to vector<8x128xf32>
    %256 = arith.subf %243, %255 : vector<8x128xf32>
    %cst_142 = arith.constant 9.99999996E-13 : f32
    %257 = vector.broadcast %cst_142 : f32 to vector<8x1xf32>
    %258 = arith.addf %254, %257 : vector<8x1xf32>
    %259 = math.rsqrt %258 : vector<8x1xf32>
    %260 = vector.broadcast %259 : vector<8x1xf32> to vector<8x128xf32>
    %261 = arith.mulf %256, %260 : vector<8x128xf32>
    %c0_143 = arith.constant 0 : index
    %c0_144 = arith.constant 0 : index
    %262 = vector.load %arg5[%c0_143, %c0_144] : memref<1x128xf32, #tpu.memory_space<vmem>>, vector<1x128xf32>
    %263 = vector.broadcast %262 : vector<1x128xf32> to vector<8x128xf32>
    %264 = arith.mulf %261, %263 : vector<8x128xf32>
    %c0_145 = arith.constant 0 : index
    %c0_146 = arith.constant 0 : index
    %265 = vector.load %arg6[%c0_145, %c0_146] : memref<1x128xf32, #tpu.memory_space<vmem>>, vector<1x128xf32>
    %266 = vector.broadcast %265 : vector<1x128xf32> to vector<8x128xf32>
    %267 = arith.addf %264, %266 : vector<8x128xf32>
    %c0_147 = arith.constant 0 : index
    %c0_148 = arith.constant 0 : index
    %268 = vector.load %arg7[%c0_147, %c0_148] : memref<8x128xf32, #tpu.memory_space<vmem>>, vector<8x128xf32>
    tpu.vector_store %arg7[%c0_147, %c0_148], %267 {strides = array<i32>} : memref<8x128xf32, #tpu.memory_space<vmem>>, vector<8x128xf32>,
    return
  }
  func.func @transform_2(%arg0: i32, %arg1: memref<16xi32, #tpu.memory_space<smem>>, %arg2: memref<16xi32, #tpu.memory_space<smem>>) -> (i32, i32) {
    %c0_i32 = arith.constant 0 : i32
    %c0_i32_0 = arith.constant 0 : i32
    %c0_i32_1 = arith.constant 0 : i32
    return %c0_i32, %c0_i32_0 : i32, i32
  }
  func.func @transform_3(%arg0: i32, %arg1: memref<16xi32, #tpu.memory_space<smem>>, %arg2: memref<16xi32, #tpu.memory_space<smem>>) -> (i32, i32) {
    %c0_i32 = arith.constant 0 : i32
    %c0_i32_0 = arith.constant 0 : i32
    %c0_i32_1 = arith.constant 0 : i32
    return %c0_i32, %c0_i32_0 : i32, i32
  }
  func.func @transform_4(%arg0: i32, %arg1: memref<16xi32, #tpu.memory_space<smem>>, %arg2: memref<16xi32, #tpu.memory_space<smem>>) -> (i32, i32) {
    %c0_i32 = arith.constant 0 : i32
    %c0_i32_0 = arith.constant 0 : i32
    return %arg0, %c0_i32 : i32, i32
  }
}

</mosaic_0001>

<llo_original>
// kernel: tpu_custom_call.1
$region0: #{tpu_custom_call.1}
  #allocation0 [shape = 'u32[]', space=smem, size = 0x4, offset = 0x4, fixed_abs, tag = 'smem constant byte address 0x4 - core index']
  #allocation1 [shape = 'u32[72,128]{1,0:T(1,128)}', space=vmem, size = 0x9000, scoped, tag = 'internal scratch']
  #allocation2 [shape = 'f32[8,128]{1,0:T(8,128)}', space=vmem, size = 0x1000, scoped, tag = 'scratch operand']
  #allocation3 [shape = 'f32[8,128]{1,0:T(8,128)}', space=vmem, size = 0x1000, scoped, tag = 'scratch operand']
  #allocation4 [shape = 's32[8]{0}', space=sflag, size = 0x20, scoped, tag = 'scratch operand']
  #allocation5 [shape = 's32[8]{0}', space=sflag, size = 0x20, scoped, tag = 'scratch operand']
  #allocation6 [shape = 's32[1]{0}', space=sflag, size = 0x4, scoped, tag = 'scoped memory for tpu_custom_call.1']
  #allocation7 [shape = 'u8[512]{0}', space=smem, size = 0x200, scoped, tag = 'prefetched SMEM operand 0']
  #allocation8 [shape = 'u8[512]{0}', space=smem, size = 0x200, scoped, tag = 'prefetched SMEM operand 1']
  #allocation11 [shape = 's32[]', space=sflag, size = 0x4, offset = 0, fixed_abs, tag = 'sflag constant byte address 0x0 - dummy sync flag']
  #allocation12 [shape = 's32[]', space=sflag, size = 0x4, offset = 0, fixed_abs, tag = 'sflag constant byte address 0x0 - dummy sync flag']
  #allocation13 [shape = 'u32[]', space=smem, size = 0x4, offset = 0x44, fixed_abs, tag = 'smem constant byte address 0x44 - assertion arg 0']
  #allocation14 [shape = 'u32[]', space=smem, size = 0x4, offset = 0x48, fixed_abs, tag = 'smem constant byte address 0x48 - assertion arg 1']
  #allocation15 [shape = 's32[]', space=sflag, size = 0x4, offset = 0, fixed_abs, tag = 'sflag constant byte address 0x0 - dummy sync flag']
  #allocation16 [shape = 's32[]', space=sflag, size = 0x4, offset = 0, fixed_abs, tag = 'sflag constant byte address 0x0 - dummy sync flag']
  #allocation17 [shape = 's32[]', space=sflag, size = 0x4, offset = 0, fixed_abs, tag = 'sflag constant byte address 0x0 - dummy sync flag']
  #allocation18 [shape = 's32[]', space=sflag, size = 0x4, offset = 0, fixed_abs, tag = 'sflag constant byte address 0x0 - dummy sync flag']
  #allocation19 [shape = 's32[]', space=sflag, size = 0x4, offset = 0, fixed_abs, tag = 'sflag constant byte address 0x0 - dummy sync flag']
  #allocation20 [shape = 's32[]', space=sflag, size = 0x4, offset = 0, fixed_abs, tag = 'sflag constant byte address 0x0 - dummy sync flag']
  #allocation21 [shape = 's32[]', space=sflag, size = 0x4, offset = 0, fixed_abs, tag = 'sflag constant byte address 0x0 - dummy sync flag']
  #allocation22 [shape = 's32[]', space=sflag, size = 0x4, offset = 0, fixed_abs, tag = 'sflag constant byte address 0x0 - dummy sync flag']
  #allocation23 [shape = 's32[]', space=sflag, size = 0x4, offset = 0, fixed_abs, tag = 'sflag constant byte address 0x0 - dummy sync flag']
  #allocation24 [shape = 's32[]', space=sflag, size = 0x4, offset = 0, fixed_abs, tag = 'sflag constant byte address 0x0 - dummy sync flag']
  #allocation25 [shape = 's32[]', space=sflag, size = 0x4, offset = 0, fixed_abs, tag = 'sflag constant byte address 0x0 - dummy sync flag']
  #allocation26 [shape = 's32[]', space=sflag, size = 0x4, offset = 0, fixed_abs, tag = 'sflag constant byte address 0x0 - dummy sync flag']
  #allocation27 [shape = 's32[]', space=sflag, size = 0x4, offset = 0, fixed_abs, tag = 'sflag constant byte address 0x0 - dummy sync flag']
  #allocation28 [shape = 's32[]', space=sflag, size = 0x4, offset = 0, fixed_abs, tag = 'sflag constant byte address 0x0 - dummy sync flag']
  #allocation29 [shape = 's32[]', space=sflag, size = 0x4, offset = 0, fixed_abs, tag = 'sflag constant byte address 0x0 - dummy sync flag']
  #allocation30 [shape = 's32[]', space=sflag, size = 0x4, offset = 0, fixed_abs, tag = 'sflag constant byte address 0x0 - dummy sync flag']
  #allocation31 [shape = 's32[]', space=sflag, size = 0x4, offset = 0, fixed_abs, tag = 'sflag constant byte address 0x0 - dummy sync flag']
  #allocation32 [shape = 's32[]', space=sflag, size = 0x4, offset = 0, fixed_abs, tag = 'sflag constant byte address 0x0 - dummy sync flag']
  #allocation33 [shape = 's32[]', space=sflag, size = 0x4, offset = 0, fixed_abs, tag = 'sflag constant byte address 0x0 - dummy sync flag']
  #allocation34 [shape = 's32[]', space=sflag, size = 0x4, offset = 0, fixed_abs, tag = 'sflag constant byte address 0x0 - dummy sync flag']
  #allocation35 [shape = 's32[]', space=sflag, size = 0x4, offset = 0, fixed_abs, tag = 'sflag constant byte address 0x0 - dummy sync flag']
  #allocation36 [shape = 's32[]', space=sflag, size = 0x4, offset = 0, fixed_abs, tag = 'sflag constant byte address 0x0 - dummy sync flag']
  #allocation37 [shape = 's32[]', space=sflag, size = 0x4, offset = 0, fixed_abs, tag = 'sflag constant byte address 0x0 - dummy sync flag']
  #allocation38 [shape = 's32[]', space=sflag, size = 0x4, offset = 0, fixed_abs, tag = 'sflag constant byte address 0x0 - dummy sync flag']
  #allocation39 [shape = 's32[]', space=sflag, size = 0x4, offset = 0, fixed_abs, tag = 'sflag constant byte address 0x0 - dummy sync flag']
  #allocation40 [shape = 's32[]', space=sflag, size = 0x4, offset = 0, fixed_abs, tag = 'sflag constant byte address 0x0 - dummy sync flag']
  #allocation41 [shape = 's32[]', space=sflag, size = 0x4, offset = 0, fixed_abs, tag = 'sflag constant byte address 0x0 - dummy sync flag']
  #allocation42 [shape = 's32[]', space=sflag, size = 0x4, offset = 0, fixed_abs, tag = 'sflag constant byte address 0x0 - dummy sync flag']
  #allocation43 [shape = 's32[]', space=sflag, size = 0x4, offset = 0, fixed_abs, tag = 'sflag constant byte address 0x0 - dummy sync flag']
  #allocation44 [shape = 's32[]', space=sflag, size = 0x4, offset = 0, fixed_abs, tag = 'sflag constant byte address 0x0 - dummy sync flag']
  %s0 = inlined_call_operand.hbm [shape: s32[16], index: 0, kind: input, shape index: {}]
  %s1 = inlined_call_operand.hbm [shape: s32[16], index: 1, kind: input, shape index: {}]
  %s2 = inlined_call_operand.hbm [shape: f32[64,128], index: 2, kind: input, shape index: {}]
  %s3 = inlined_call_operand.hbm [shape: f32[16,128], index: 3, kind: input, shape index: {}]
  %s4 = inlined_call_operand.vmem [shape: f32[1,128], index: 4, kind: input, shape index: {}]
  %s5 = inlined_call_operand.vmem [shape: f32[1,128], index: 5, kind: input, shape index: {}]
  %s6 = inlined_call_operand.hbm [shape: f32[16,128], index: 6, kind: output, shape index: {}]
  %s7 = sld [smem:[#allocation0]]
  $region105: #{tpu_custom_call.1} parent=0
    _
  %s9 = ssub.s32 1, %s7
  %s10 = scalar_select 0, %s9, %s7
  %s12 = sshll.u32 %s0, 4
  %s13 = int_to_ptr.hbm [resolvable:$true] %s12
  %15 = dma.hbm_to_smem %s13, 16, [#allocation7], [#allocation6]
  %s17 = sshll.u32 %s1, 4
  %s18 = int_to_ptr.hbm [resolvable:$true] %s17
  %20 = dma.hbm_to_smem %s18, 16, [#allocation8], [#allocation6]
  %22 = dma.done [#allocation6], 32
  %23 = sfence
  $region1: #{tpu_custom_call.1} parent=0
    #allocation9 [shape = 'u8[8192]{0}', space=vmem, size = 0x2000, scoped, tag = 'output window, operand 0']
    #allocation10 [shape = 's32[2]{0}', space=sflag, size = 0x8, scoped, tag = 'scoped memory for tpu_custom_call.1']
    %24 = vsyncpa [#allocation10], 0
    %s25 = scalar_lea.sflag [#allocation10], 1
    %26 = vsyncpa %s25, 0
    loop: start=0, step=1, limit=4
    $region2: #{tpu_custom_call.1} parent=1 // loop_pre_header
      _
    $region3: #{tpu_custom_call.1} parent=1 // loop_header
      %s28 = sphi 0, %s32
      %p29 = scmp.ge.s32.totalorder %s28, 4
      %s36 = sphi 0, %s36
      %s38 = sphi 0, %s36
      %s39 = sphi 0, %s38
      %s53 = sphi 0, %s39
      %s57 = sphi 0, %s57
      %s59 = sphi 0, %s57
      %s60 = sphi 0, %s59
      %s74 = sphi 0, %s60
      %s80 = sphi 0, %s82
      %s83 = sphi 0, %s80
      %s84 = sphi 0, %s83
      %s100 = sphi 0, %s84
    $region4: #{tpu_custom_call.1} parent=1 // loop_header_branch
      %31 = sbr.rel (%p29) target = $region8
    $region5: #{tpu_custom_call.1} parent=1 // loop_body
      %s33 = ssub.s32 %s28, 1
      %s34 = ssub.s32 %s28, 2
      %s35 = sadd.s32 %s28, 1
      %s37 = sadd.s32 %s36, 1
      %p40 = scmp.eq.s32.totalorder %s28, 1
      %p41 = scmp.ne.s32.totalorder %s36, %s38
      %p42 = scmp.eq.s32.totalorder %s28, 0
      %p43 = por %p41, %p42
      %p44 = scmp.ne.s32.totalorder %s36, %s38
      %p45 = scmp.eq.s32.totalorder %s33, 1
      %p46 = por %p44, %p45
      %p47 = scmp.ne.s32.totalorder %s38, %s39
      %p48 = scmp.eq.s32.totalorder %s33, 0
      %p49 = por %p47, %p48
      %p50 = scmp.ne.s32.totalorder %s38, %s39
      %p51 = scmp.eq.s32.totalorder %s34, 1
      %p52 = por %p50, %p51
      %p54 = scmp.ne.s32.totalorder %s39, %s53
      %p55 = scmp.eq.s32.totalorder %s34, 0
      %p56 = por %p54, %p55
      %s58 = sadd.s32 %s57, 1
      %p61 = scmp.eq.s32.totalorder %s28, 1
      %p62 = scmp.ne.s32.totalorder %s57, %s59
      %p63 = scmp.eq.s32.totalorder %s28, 0
      %p64 = por %p62, %p63
      %p65 = scmp.ne.s32.totalorder %s57, %s59
      %p66 = scmp.eq.s32.totalorder %s33, 1
      %p67 = por %p65, %p66
      %p68 = scmp.ne.s32.totalorder %s59, %s60
      %p69 = scmp.eq.s32.totalorder %s33, 0
      %p70 = por %p68, %p69
      %p71 = scmp.ne.s32.totalorder %s59, %s60
      %p72 = scmp.eq.s32.totalorder %s34, 1
      %p73 = por %p71, %p72
      %p75 = scmp.ne.s32.totalorder %s60, %s74
      %p76 = scmp.eq.s32.totalorder %s34, 0
      %p77 = por %p75, %p76
      %s78 = ssub.s32 %s28, %s35
      %p79 = scmp.eq.s32.totalorder %s78, 0
      %s81 = sadd.s32 %s80, 1
      %s82 = scalar_select %p79, %s80, %s81
      %p85 = pneg %p79
      %p86 = scmp.eq.s32.totalorder %s28, 1
      %p87 = por %p85, %p86
      %p88 = scmp.ne.s32.totalorder %s80, %s83
      %p89 = scmp.eq.s32.totalorder %s28, 0
      %p90 = por %p88, %p89
      %p91 = scmp.ne.s32.totalorder %s80, %s83
      %p92 = scmp.eq.s32.totalorder %s33, 1
      %p93 = por %p91, %p92
      %p94 = scmp.ne.s32.totalorder %s83, %s84
      %p95 = scmp.eq.s32.totalorder %s33, 0
      %p96 = por %p94, %p95
      %p97 = scmp.ne.s32.totalorder %s83, %s84
      %p98 = scmp.eq.s32.totalorder %s34, 1
      %p99 = por %p97, %p98
      %p101 = scmp.ne.s32.totalorder %s84, %s100
      %p102 = scmp.eq.s32.totalorder %s34, 0
      %p103 = por %p101, %p102
      %p104 = scmp.le.s32.totalorder 1, %s28
      %p105 = scmp.lt.s32.totalorder %s28, 3
      %p106 = pnand %p104, %p105
      %p107 = pneg %p106
      // Predicated region
      $region9: #{tpu_custom_call.1} parent=5 // pred_check
        _
      $region10: #{tpu_custom_call.1} parent=5 // pred_check_branch
        %109 = sbr.rel (%p106) target = $region12
      $region11: #{tpu_custom_call.1} parent=5 // pred_region
        %s110 = ssub.s32 %s28, 1
        // Predicated region
        $region13: #{tpu_custom_call.1} parent=11 // pred_check
          %p111 = pneg %p49
        $region14: #{tpu_custom_call.1} parent=11 // pred_check_branch
          %113 = sbr.rel (%p111) target = $region16
        $region15: #{tpu_custom_call.1} parent=11 // pred_region
          _
        $region16: #{tpu_custom_call.1} parent=11 // pred_fallthru
          _
        // Predicated region
        $region17: #{tpu_custom_call.1} parent=11 // pred_check
          %p114 = pneg %p70
        $region18: #{tpu_custom_call.1} parent=11 // pred_check_branch
          %116 = sbr.rel (%p114) target = $region20
        $region19: #{tpu_custom_call.1} parent=11 // pred_region
          _
        $region20: #{tpu_custom_call.1} parent=11 // pred_fallthru
          _
      $region12: #{tpu_custom_call.1} parent=5 // pred_fallthru
        _
      %p117 = scmp.lt.s32.totalorder %s28, 2
      // Predicated region
      $region21: #{tpu_custom_call.1} parent=5 // pred_check
        %p118 = pneg %p117
      $region22: #{tpu_custom_call.1} parent=5 // pred_check_branch
        %120 = sbr.rel (%p118) target = $region24
      $region23: #{tpu_custom_call.1} parent=5 // pred_region
        _
      $region24: #{tpu_custom_call.1} parent=5 // pred_fallthru
        _
      %p121 = scmp.le.s32.totalorder 1, %s28
      %p122 = scmp.lt.s32.totalorder %s28, 3
      %p123 = pnand %p121, %p122
      %p124 = pneg %p123
      // Predicated region
      $region25: #{tpu_custom_call.1} parent=5 // pred_check
        _
      $region26: #{tpu_custom_call.1} parent=5 // pred_check_branch
        %126 = sbr.rel (%p123) target = $region28
      $region27: #{tpu_custom_call.1} parent=5 // pred_region
        %s127 = ssub.s32 %s28, 1
        %p128 = pneg %p49
        %p129 = pneg %p46
        %p130 = pneg %p70
        %p131 = pneg %p67
        %p132 = pneg %p96
        %p133 = pneg %p93
        %s134 = sand.u32 %s83, 1
        %s135 = scalar_lea.sflag [#allocation10], %s134
        %s136 = sand.u32 %s83, 1
        %s137 = smul.addr %s136, 8
        %s138 = scalar_lea.vmem [#allocation9], %s137
        %s139 = smul.u32 %s33, 8
        %s140 = sld [smem:[#allocation7 + %s139]]
        %s141 = sld [smem:[#allocation8 + %s139]]
        %s142 = scalar_lea.hbm %s2, %s140
        // Predicated region
        $region29: #{tpu_custom_call.1} parent=27 // pred_check
          _
        $region30: #{tpu_custom_call.1} parent=27 // pred_check_branch
          %144 = sbr.rel target = $region32
        $region31: #{tpu_custom_call.1} parent=27 // pred_region
          %145 = sst [smem:[#allocation13]] [#allocation12]
          %146 = sst [smem:[#allocation14]] [#allocation11]
        $region32: #{tpu_custom_call.1} parent=27 // pred_fallthru
          _
        %148 = shalt.err (0)
        %s150 = sshll.u32 %s142, 4
        %s151 = int_to_ptr.hbm [resolvable:$true] %s150
        %s152 = sshll.u32 [#allocation2], 4
        %s153 = int_to_ptr.vmem [resolvable:$true] %s152
        %155 = dma.hbm_to_vmem [thread:$0]  %s151, 16, %s153, [#allocation4]
        %s156 = scalar_lea.hbm %s3, %s141
        // Predicated region
        $region33: #{tpu_custom_call.1} parent=27 // pred_check
          _
        $region34: #{tpu_custom_call.1} parent=27 // pred_check_branch
          %158 = sbr.rel target = $region36
        $region35: #{tpu_custom_call.1} parent=27 // pred_region
          %159 = sst [smem:[#allocation13]] [#allocation16]
          %160 = sst [smem:[#allocation14]] [#allocation15]
        $region36: #{tpu_custom_call.1} parent=27 // pred_fallthru
          _
        %162 = shalt.err (0)
        %s164 = sshll.u32 %s156, 4
        %s165 = int_to_ptr.hbm [resolvable:$true] %s164
        %s166 = sshll.u32 [#allocation3], 4
        %s167 = int_to_ptr.vmem [resolvable:$true] %s166
        %169 = dma.hbm_to_vmem [thread:$0]  %s165, 16, %s167, [#allocation5]
        %s170 = sadd.s32 %s139, 1
        %s171 = sld [smem:[#allocation7 + %s170]]
        %s172 = sld [smem:[#allocation8 + %s170]]
        %s173 = scalar_lea.hbm %s2, %s171
        %s174 = scalar_lea.vmem [#allocation2], 1
        %s175 = scalar_lea.sflag [#allocation4], 1
        // Predicated region
        $region37: #{tpu_custom_call.1} parent=27 // pred_check
          _
        $region38: #{tpu_custom_call.1} parent=27 // pred_check_branch
          %177 = sbr.rel target = $region40
        $region39: #{tpu_custom_call.1} parent=27 // pred_region
          %178 = sst [smem:[#allocation13]] [#allocation18]
          %179 = sst [smem:[#allocation14]] [#allocation17]
        $region40: #{tpu_custom_call.1} parent=27 // pred_fallthru
          _
        %181 = shalt.err (0)
        %s183 = sshll.u32 %s173, 4
        %s184 = int_to_ptr.hbm [resolvable:$true] %s183
        %s185 = sshll.u32 %s174, 4
        %s186 = int_to_ptr.vmem [resolvable:$true] %s185
        %188 = dma.hbm_to_vmem [thread:$0]  %s184, 16, %s186, %s175
        %s189 = scalar_lea.hbm %s3, %s172
        %s190 = scalar_lea.vmem [#allocation3], 1
        %s191 = scalar_lea.sflag [#allocation5], 1
        // Predicated region
        $region41: #{tpu_custom_call.1} parent=27 // pred_check
          _
        $region42: #{tpu_custom_call.1} parent=27 // pred_check_branch
          %193 = sbr.rel target = $region44
        $region43: #{tpu_custom_call.1} parent=27 // pred_region
          %194 = sst [smem:[#allocation13]] [#allocation20]
          %195 = sst [smem:[#allocation14]] [#allocation19]
        $region44: #{tpu_custom_call.1} parent=27 // pred_fallthru
          _
        %197 = shalt.err (0)
        %s199 = sshll.u32 %s189, 4
        %s200 = int_to_ptr.hbm [resolvable:$true] %s199
        %s201 = sshll.u32 %s190, 4
        %s202 = int_to_ptr.vmem [resolvable:$true] %s201
        %204 = dma.hbm_to_vmem [thread:$0]  %s200, 16, %s202, %s191
        %s205 = sadd.s32 %s139, 2
        %s206 = sld [smem:[#allocation7 + %s205]]
        %s207 = sld [smem:[#allocation8 + %s205]]
        %s208 = scalar_lea.hbm %s2, %s206
        %s209 = scalar_lea.vmem [#allocation2], 2
        %s210 = scalar_lea.sflag [#allocation4], 2
        // Predicated region
        $region45: #{tpu_custom_call.1} parent=27 // pred_check
          _
        $region46: #{tpu_custom_call.1} parent=27 // pred_check_branch
          %212 = sbr.rel target = $region48
        $region47: #{tpu_custom_call.1} parent=27 // pred_region
          %213 = sst [smem:[#allocation13]] [#allocation22]
          %214 = sst [smem:[#allocation14]] [#allocation21]
        $region48: #{tpu_custom_call.1} parent=27 // pred_fallthru
          _
        %216 = shalt.err (0)
        %s218 = sshll.u32 %s208, 4
        %s219 = int_to_ptr.hbm [resolvable:$true] %s218
        %s220 = sshll.u32 %s209, 4
        %s221 = int_to_ptr.vmem [resolvable:$true] %s220
        %223 = dma.hbm_to_vmem [thread:$0]  %s219, 16, %s221, %s210
        %s224 = scalar_lea.hbm %s3, %s207
        %s225 = scalar_lea.vmem [#allocation3], 2
        %s226 = scalar_lea.sflag [#allocation5], 2
        // Predicated region
        $region49: #{tpu_custom_call.1} parent=27 // pred_check
          _
        $region50: #{tpu_custom_call.1} parent=27 // pred_check_branch
          %228 = sbr.rel target = $region52
        $region51: #{tpu_custom_call.1} parent=27 // pred_region
          %229 = sst [smem:[#allocation13]] [#allocation24]
          %230 = sst [smem:[#allocation14]] [#allocation23]
        $region52: #{tpu_custom_call.1} parent=27 // pred_fallthru
          _
        %232 = shalt.err (0)
        %s234 = sshll.u32 %s224, 4
        %s235 = int_to_ptr.hbm [resolvable:$true] %s234
        %s236 = sshll.u32 %s225, 4
        %s237 = int_to_ptr.vmem [resolvable:$true] %s236
        %239 = dma.hbm_to_vmem [thread:$0]  %s235, 16, %s237, %s226
        %s240 = sadd.s32 %s139, 3
        %s241 = sld [smem:[#allocation7 + %s240]]
        %s242 = sld [smem:[#allocation8 + %s240]]
        %s243 = scalar_lea.hbm %s2, %s241
        %s244 = scalar_lea.vmem [#allocation2], 3
        %s245 = scalar_lea.sflag [#allocation4], 3
        // Predicated region
        $region53: #{tpu_custom_call.1} parent=27 // pred_check
          _
        $region54: #{tpu_custom_call.1} parent=27 // pred_check_branch
          %247 = sbr.rel target = $region56
        $region55: #{tpu_custom_call.1} parent=27 // pred_region
          %248 = sst [smem:[#allocation13]] [#allocation26]
          %249 = sst [smem:[#allocation14]] [#allocation25]
        $region56: #{tpu_custom_call.1} parent=27 // pred_fallthru
          _
        %251 = shalt.err (0)
        %s253 = sshll.u32 %s243, 4
        %s254 = int_to_ptr.hbm [resolvable:$true] %s253
        %s255 = sshll.u32 %s244, 4
        %s256 = int_to_ptr.vmem [resolvable:$true] %s255
        %258 = dma.hbm_to_vmem [thread:$0]  %s254, 16, %s256, %s245
        %s259 = scalar_lea.hbm %s3, %s242
        %s260 = scalar_lea.vmem [#allocation3], 3
        %s261 = scalar_lea.sflag [#allocation5], 3
        // Predicated region
        $region57: #{tpu_custom_call.1} parent=27 // pred_check
          _
        $region58: #{tpu_custom_call.1} parent=27 // pred_check_branch
          %263 = sbr.rel target = $region60
        $region59: #{tpu_custom_call.1} parent=27 // pred_region
          %264 = sst [smem:[#allocation13]] [#allocation28]
          %265 = sst [smem:[#allocation14]] [#allocation27]
        $region60: #{tpu_custom_call.1} parent=27 // pred_fallthru
          _
        %267 = shalt.err (0)
        %s269 = sshll.u32 %s259, 4
        %s270 = int_to_ptr.hbm [resolvable:$true] %s269
        %s271 = sshll.u32 %s260, 4
        %s272 = int_to_ptr.vmem [resolvable:$true] %s271
        %274 = dma.hbm_to_vmem [thread:$0]  %s270, 16, %s272, %s261
        %s275 = sadd.s32 %s139, 4
        %s276 = sld [smem:[#allocation7 + %s275]]
        %s277 = sld [smem:[#allocation8 + %s275]]
        %s278 = scalar_lea.hbm %s2, %s276
        %s279 = scalar_lea.vmem [#allocation2], 4
        %s280 = scalar_lea.sflag [#allocation4], 4
        // Predicated region
        $region61: #{tpu_custom_call.1} parent=27 // pred_check
          _
        $region62: #{tpu_custom_call.1} parent=27 // pred_check_branch
          %282 = sbr.rel target = $region64
        $region63: #{tpu_custom_call.1} parent=27 // pred_region
          %283 = sst [smem:[#allocation13]] [#allocation30]
          %284 = sst [smem:[#allocation14]] [#allocation29]
        $region64: #{tpu_custom_call.1} parent=27 // pred_fallthru
          _
        %286 = shalt.err (0)
        %s288 = sshll.u32 %s278, 4
        %s289 = int_to_ptr.hbm [resolvable:$true] %s288
        %s290 = sshll.u32 %s279, 4
        %s291 = int_to_ptr.vmem [resolvable:$true] %s290
        %293 = dma.hbm_to_vmem [thread:$0]  %s289, 16, %s291, %s280
        %s294 = scalar_lea.hbm %s3, %s277
        %s295 = scalar_lea.vmem [#allocation3], 4
        %s296 = scalar_lea.sflag [#allocation5], 4
        // Predicated region
        $region65: #{tpu_custom_call.1} parent=27 // pred_check
          _
        $region66: #{tpu_custom_call.1} parent=27 // pred_check_branch
          %298 = sbr.rel target = $region68
        $region67: #{tpu_custom_call.1} parent=27 // pred_region
          %299 = sst [smem:[#allocation13]] [#allocation32]
          %300 = sst [smem:[#allocation14]] [#allocation31]
        $region68: #{tpu_custom_call.1} parent=27 // pred_fallthru
          _
        %302 = shalt.err (0)
        %s304 = sshll.u32 %s294, 4
        %s305 = int_to_ptr.hbm [resolvable:$true] %s304
        %s306 = sshll.u32 %s295, 4
        %s307 = int_to_ptr.vmem [resolvable:$true] %s306
        %309 = dma.hbm_to_vmem [thread:$0]  %s305, 16, %s307, %s296
        %s310 = sadd.s32 %s139, 5
        %s311 = sld [smem:[#allocation7 + %s310]]
        %s312 = sld [smem:[#allocation8 + %s310]]
        %s313 = scalar_lea.hbm %s2, %s311
        %s314 = scalar_lea.vmem [#allocation2], 5
        %s315 = scalar_lea.sflag [#allocation4], 5
        // Predicated region
        $region69: #{tpu_custom_call.1} parent=27 // pred_check
          _
        $region70: #{tpu_custom_call.1} parent=27 // pred_check_branch
          %317 = sbr.rel target = $region72
        $region71: #{tpu_custom_call.1} parent=27 // pred_region
          %318 = sst [smem:[#allocation13]] [#allocation34]
          %319 = sst [smem:[#allocation14]] [#allocation33]
        $region72: #{tpu_custom_call.1} parent=27 // pred_fallthru
          _
        %321 = shalt.err (0)
        %s323 = sshll.u32 %s313, 4
        %s324 = int_to_ptr.hbm [resolvable:$true] %s323
        %s325 = sshll.u32 %s314, 4
        %s326 = int_to_ptr.vmem [resolvable:$true] %s325
        %328 = dma.hbm_to_vmem [thread:$0]  %s324, 16, %s326, %s315
        %s329 = scalar_lea.hbm %s3, %s312
        %s330 = scalar_lea.vmem [#allocation3], 5
        %s331 = scalar_lea.sflag [#allocation5], 5
        // Predicated region
        $region73: #{tpu_custom_call.1} parent=27 // pred_check
          _
        $region74: #{tpu_custom_call.1} parent=27 // pred_check_branch
          %333 = sbr.rel target = $region76
        $region75: #{tpu_custom_call.1} parent=27 // pred_region
          %334 = sst [smem:[#allocation13]] [#allocation36]
          %335 = sst [smem:[#allocation14]] [#allocation35]
        $region76: #{tpu_custom_call.1} parent=27 // pred_fallthru
          _
        %337 = shalt.err (0)
        %s339 = sshll.u32 %s329, 4
        %s340 = int_to_ptr.hbm [resolvable:$true] %s339
        %s341 = sshll.u32 %s330, 4
        %s342 = int_to_ptr.vmem [resolvable:$true] %s341
        %344 = dma.hbm_to_vmem [thread:$0]  %s340, 16, %s342, %s331
        %s345 = sadd.s32 %s139, 6
        %s346 = sld [smem:[#allocation7 + %s345]]
        %s347 = sld [smem:[#allocation8 + %s345]]
        %s348 = scalar_lea.hbm %s2, %s346
        %s349 = scalar_lea.vmem [#allocation2], 6
        %s350 = scalar_lea.sflag [#allocation4], 6
        // Predicated region
        $region77: #{tpu_custom_call.1} parent=27 // pred_check
          _
        $region78: #{tpu_custom_call.1} parent=27 // pred_check_branch
          %352 = sbr.rel target = $region80
        $region79: #{tpu_custom_call.1} parent=27 // pred_region
          %353 = sst [smem:[#allocation13]] [#allocation38]
          %354 = sst [smem:[#allocation14]] [#allocation37]
        $region80: #{tpu_custom_call.1} parent=27 // pred_fallthru
          _
        %356 = shalt.err (0)
        %s358 = sshll.u32 %s348, 4
        %s359 = int_to_ptr.hbm [resolvable:$true] %s358
        %s360 = sshll.u32 %s349, 4
        %s361 = int_to_ptr.vmem [resolvable:$true] %s360
        %363 = dma.hbm_to_vmem [thread:$0]  %s359, 16, %s361, %s350
        %s364 = scalar_lea.hbm %s3, %s347
        %s365 = scalar_lea.vmem [#allocation3], 6
        %s366 = scalar_lea.sflag [#allocation5], 6
        // Predicated region
        $region81: #{tpu_custom_call.1} parent=27 // pred_check
          _
        $region82: #{tpu_custom_call.1} parent=27 // pred_check_branch
          %368 = sbr.rel target = $region84
        $region83: #{tpu_custom_call.1} parent=27 // pred_region
          %369 = sst [smem:[#allocation13]] [#allocation40]
          %370 = sst [smem:[#allocation14]] [#allocation39]
        $region84: #{tpu_custom_call.1} parent=27 // pred_fallthru
          _
        %372 = shalt.err (0)
        %s374 = sshll.u32 %s364, 4
        %s375 = int_to_ptr.hbm [resolvable:$true] %s374
        %s376 = sshll.u32 %s365, 4
        %s377 = int_to_ptr.vmem [resolvable:$true] %s376
        %379 = dma.hbm_to_vmem [thread:$0]  %s375, 16, %s377, %s366
        %s380 = sadd.s32 %s139, 7
        %s381 = sld [smem:[#allocation7 + %s380]]
        %s382 = sld [smem:[#allocation8 + %s380]]
        %s383 = scalar_lea.hbm %s2, %s381
        %s384 = scalar_lea.vmem [#allocation2], 7
        %s385 = scalar_lea.sflag [#allocation4], 7
        // Predicated region
        $region85: #{tpu_custom_call.1} parent=27 // pred_check
          _
        $region86: #{tpu_custom_call.1} parent=27 // pred_check_branch
          %387 = sbr.rel target = $region88
        $region87: #{tpu_custom_call.1} parent=27 // pred_region
          %388 = sst [smem:[#allocation13]] [#allocation42]
          %389 = sst [smem:[#allocation14]] [#allocation41]
        $region88: #{tpu_custom_call.1} parent=27 // pred_fallthru
          _
        %391 = shalt.err (0)
        %s393 = sshll.u32 %s383, 4
        %s394 = int_to_ptr.hbm [resolvable:$true] %s393
        %s395 = sshll.u32 %s384, 4
        %s396 = int_to_ptr.vmem [resolvable:$true] %s395
        %398 = dma.hbm_to_vmem [thread:$0]  %s394, 16, %s396, %s385
        %s399 = scalar_lea.hbm %s3, %s382
        %s400 = scalar_lea.vmem [#allocation3], 7
        %s401 = scalar_lea.sflag [#allocation5], 7
        // Predicated region
        $region89: #{tpu_custom_call.1} parent=27 // pred_check
          _
        $region90: #{tpu_custom_call.1} parent=27 // pred_check_branch
          %403 = sbr.rel target = $region92
        $region91: #{tpu_custom_call.1} parent=27 // pred_region
          %404 = sst [smem:[#allocation13]] [#allocation44]
          %405 = sst [smem:[#allocation14]] [#allocation43]
        $region92: #{tpu_custom_call.1} parent=27 // pred_fallthru
          _
        %407 = shalt.err (0)
        %s409 = sshll.u32 %s399, 4
        %s410 = int_to_ptr.hbm [resolvable:$true] %s409
        %s411 = sshll.u32 %s400, 4
        %s412 = int_to_ptr.vmem [resolvable:$true] %s411
        %414 = dma.hbm_to_vmem [thread:$0]  %s410, 16, %s412, %s401
        %416 = dma.done [#allocation4], 16
        %418 = dma.done [#allocation5], 16
        %420 = dma.done %s175, 16
        %422 = dma.done %s191, 16
        %424 = dma.done %s210, 16
        %426 = dma.done %s226, 16
        %428 = dma.done %s245, 16
        %430 = dma.done %s261, 16
        %432 = dma.done %s280, 16
        %434 = dma.done %s296, 16
        %436 = dma.done %s315, 16
        %438 = dma.done %s331, 16
        %440 = dma.done %s350, 16
        %442 = dma.done %s366, 16
        %444 = dma.done %s385, 16
        %446 = dma.done %s401, 16
        %v447 = vld [vmem:[#allocation2] sm:$0xff]
        %v448 = vld [vmem:[#allocation3] sm:$0xff]
        %v449 = vadd.f32 %v447, %v448
        %450 = vadd.xlane.f32.xlu0 %v449
        %v451 = vpop.xlane.xlu0 %450
        %v452 = vrcp.pop 128.0
        %v453 = vmul.f32 128.0, %v452
        %v454 = vsub.f32 1.0, %v453
        %v455 = vmul.f32 %v452, %v454
        %v456 = vadd.f32 %v452, %v455
        %vm457 = vweird.f32 %v452
        %v458 = vsel %vm457, %v452, %v456
        %v459 = vmul.f32 %v451, %v458
        %v460 = vsub.f32 %v449, %v459
        %v461 = vmul.f32 %v460, %v460
        %462 = vadd.xlane.f32.xlu0 %v461
        %v463 = vpop.xlane.xlu0 %462
        %v464 = vmul.f32 %v463, %v458
        %v465 = vadd.f32 %v464, 1e-12
        %v466 = vrsqrt.pop %v465
        %v467 = vmul.f32 %v466, %v465
        %v468 = vmul.f32 %v467, %v466
        %v469 = vmul.f32 0.5, %v468
        %v470 = vsub.f32 1.5, %v469
        %v471 = vmul.f32 %v466, %v470
        %vm472 = vweird.f32 %v465
        %vm473 = vweird.f32 %v466
        %vm474 = vmor %vm472, %vm473
        %v475 = vsel %vm474, %v466, %v471
        %v476 = vmul.f32 %v460, %v475
        %v477 = vld [vmem:[%s4] sm:$0x1]
        %v479 = vperm.slane %v477, 0
        %v481 = vmul.f32 %v476, %v479
        %v482 = vld [vmem:[%s5] sm:$0x1]
        %v484 = vperm.slane %v482, 0
        %v486 = vadd.f32 %v481, %v484
        %487 = vst [vmem:[%s138] sm:$0xff] %v486
        %s488 = sand.u32 %s83, 1
        %s489 = scalar_lea.sflag [#allocation10], %s488
        %s490 = sand.u32 %s83, 1
        %s491 = smul.addr %s490, 8
        %s492 = scalar_lea.vmem [#allocation9], %s491
        // Predicated region
        $region93: #{tpu_custom_call.1} parent=27 // pred_check
          %p493 = pneg %p93
        $region94: #{tpu_custom_call.1} parent=27 // pred_check_branch
          %495 = sbr.rel (%p493) target = $region96
        $region95: #{tpu_custom_call.1} parent=27 // pred_region
          %497 = vsyncadd %s489, 0
          %s498 = smul.addr %s33, 8
          %s499 = scalar_lea.hbm %s6, %s498
          %s501 = sshll.u32 %s492, 4
          %s502 = int_to_ptr.vmem [resolvable:$true] %s501
          %s503 = sshll.u32 %s499, 4
          %s504 = int_to_ptr.hbm [resolvable:$true] %s503
          %506 = dma.vmem_to_hbm [thread:$0]  %s502, 128, %s504, %s489
        $region96: #{tpu_custom_call.1} parent=27 // pred_fallthru
          _
      $region28: #{tpu_custom_call.1} parent=5 // pred_fallthru
        _
      %p507 = scmp.le.s32.totalorder 2, %s28
      // Predicated region
      $region97: #{tpu_custom_call.1} parent=5 // pred_check
        %p508 = pneg %p507
      $region98: #{tpu_custom_call.1} parent=5 // pred_check_branch
        %510 = sbr.rel (%p508) target = $region100
      $region99: #{tpu_custom_call.1} parent=5 // pred_region
        %s511 = ssub.s32 %s28, 2
        // Predicated region
        $region101: #{tpu_custom_call.1} parent=99 // pred_check
          %p512 = pneg %p99
        $region102: #{tpu_custom_call.1} parent=99 // pred_check_branch
          %514 = sbr.rel (%p512) target = $region104
        $region103: #{tpu_custom_call.1} parent=99 // pred_region
          %s515 = sand.u32 %s84, 1
          %s516 = scalar_lea.sflag [#allocation10], %s515
          %s517 = sand.u32 %s84, 1
          %s518 = smul.addr %s517, 8
          %s519 = scalar_lea.vmem [#allocation9], %s518
          %521 = dma.done %s516, 128
        $region104: #{tpu_custom_call.1} parent=99 // pred_fallthru
          _
      $region100: #{tpu_custom_call.1} parent=5 // pred_fallthru
        _
    $region6: #{tpu_custom_call.1} parent=1 // loop_footer
      %s32 = sadd.s32 1, %s28
    $region7: #{tpu_custom_call.1} parent=1 // loop_footer_branch
      %27 = sbr.rel target = $region3
    $region8: #{tpu_custom_call.1} parent=1 // loop_exit
      _
    %522 = vsyncpa [#allocation10], 1
    %s523 = scalar_lea.sflag [#allocation10], 1
    %524 = vsyncpa %s523, 1
  %525 = vsyncmov [#allocation4]
  %s526 = vpop.sfrf %525
  %p527 = scmp.eq.s32.totalorder %s526, 0
  %p528 = pneg %p527
  %530 = shalt.err (%p528)
  %s531 = scalar_lea.sflag [#allocation4], 1
  %532 = vsyncmov %s531
  %s533 = vpop.sfrf %532
  %p534 = scmp.eq.s32.totalorder %s533, 0
  %p535 = pneg %p534
  %537 = shalt.err (%p535)
  %s538 = scalar_lea.sflag [#allocation4], 2
  %539 = vsyncmov %s538
  %s540 = vpop.sfrf %539
  %p541 = scmp.eq.s32.totalorder %s540, 0
  %p542 = pneg %p541
  %544 = shalt.err (%p542)
  %s545 = scalar_lea.sflag [#allocation4], 3
  %546 = vsyncmov %s545
  %s547 = vpop.sfrf %546
  %p548 = scmp.eq.s32.totalorder %s547, 0
  %p549 = pneg %p548
  %551 = shalt.err (%p549)
  %s552 = scalar_lea.sflag [#allocation4], 4
  %553 = vsyncmov %s552
  %s554 = vpop.sfrf %553
  %p555 = scmp.eq.s32.totalorder %s554, 0
  %p556 = pneg %p555
  %558 = shalt.err (%p556)
  %s559 = scalar_lea.sflag [#allocation4], 5
  %560 = vsyncmov %s559
  %s561 = vpop.sfrf %560
  %p562 = scmp.eq.s32.totalorder %s561, 0
  %p563 = pneg %p562
  %565 = shalt.err (%p563)
  %s566 = scalar_lea.sflag [#allocation4], 6
  %567 = vsyncmov %s566
  %s568 = vpop.sfrf %567
  %p569 = scmp.eq.s32.totalorder %s568, 0
  %p570 = pneg %p569
  %572 = shalt.err (%p570)
  %s573 = scalar_lea.sflag [#allocation4], 7
  %574 = vsyncmov %s573
  %s575 = vpop.sfrf %574
  %p576 = scmp.eq.s32.totalorder %s575, 0
  %p577 = pneg %p576
  %579 = shalt.err (%p577)
  %580 = vsyncmov [#allocation5]
  %s581 = vpop.sfrf %580
  %p582 = scmp.eq.s32.totalorder %s581, 0
  %p583 = pneg %p582
  %585 = shalt.err (%p583)
  %s586 = scalar_lea.sflag [#allocation5], 1
  %587 = vsyncmov %s586
  %s588 = vpop.sfrf %587
  %p589 = scmp.eq.s32.totalorder %s588, 0
  %p590 = pneg %p589
  %592 = shalt.err (%p590)
  %s593 = scalar_lea.sflag [#allocation5], 2
  %594 = vsyncmov %s593
  %s595 = vpop.sfrf %594
  %p596 = scmp.eq.s32.totalorder %s595, 0
  %p597 = pneg %p596
  %599 = shalt.err (%p597)
  %s600 = scalar_lea.sflag [#allocation5], 3
  %601 = vsyncmov %s600
  %s602 = vpop.sfrf %601
  %p603 = scmp.eq.s32.totalorder %s602, 0
  %p604 = pneg %p603
  %606 = shalt.err (%p604)
  %s607 = scalar_lea.sflag [#allocation5], 4
  %608 = vsyncmov %s607
  %s609 = vpop.sfrf %608
  %p610 = scmp.eq.s32.totalorder %s609, 0
  %p611 = pneg %p610
  %613 = shalt.err (%p611)
  %s614 = scalar_lea.sflag [#allocation5], 5
  %615 = vsyncmov %s614
  %s616 = vpop.sfrf %615
  %p617 = scmp.eq.s32.totalorder %s616, 0
  %p618 = pneg %p617
  %620 = shalt.err (%p618)
  %s621 = scalar_lea.sflag [#allocation5], 6
  %622 = vsyncmov %s621
  %s623 = vpop.sfrf %622
  %p624 = scmp.eq.s32.totalorder %s623, 0
  %p625 = pneg %p624
  %627 = shalt.err (%p625)
  %s628 = scalar_lea.sflag [#allocation5], 7
  %629 = vsyncmov %s628
  %s630 = vpop.sfrf %629
  %p631 = scmp.eq.s32.totalorder %s630, 0
  %p632 = pneg %p631
  %634 = shalt.err (%p632)

</llo_original>
